<compile_context>
chip_gen: v6e
topology: v6e:2x2x1
jax: 0.10.0
libtpu: 0.0.40
codegen_flags: <defaults>
</compile_context>

<pallas_src>
import functools
import math

import jax
import jax.numpy as jnp
from jax.experimental import pallas as pl
from jax.experimental.pallas import tpu as pltpu

_MXU_DTYPE = jnp.bfloat16
# Scoped-VMEM ceiling with headroom under v7x's 64 MiB physical VMEM per TensorCore
# (merely conservative on v5e/v6e's 128 MiB).
_VMEM_LIMIT = 48 * 1024 * 1024


def _round_up(x, m):
    return ((x + m - 1) // m) * m


def _row_tiling(m):
    """Pick the largest MXU-friendly row tile; pad only when nothing divides."""
    for tm in (256, 128, 64, 32, 16, 8):
        if m % tm == 0:
            return tm, m
    tm = 128 if m > 128 else _round_up(m, 8)
    return tm, _round_up(m, tm)


def _pad_rows(x, mp):
    m = x.shape[0]
    if mp == m:
        return x
    return jnp.pad(x, ((0, mp - m), (0, 0)))


# --------------------------------------------------------------------------------------
# GELU, tanh form (transcendental goes to the EUP slot; keeps FFN1 MXU-bound on v6e/v7x).
# TODO(synk): exact-erf GELU would need an erf lowering; tanh form is the standard
# bf16-accurate substitute recommended by the perf review.
# --------------------------------------------------------------------------------------
def _gelu_tanh(x):
    c = math.sqrt(2.0 / math.pi)
    return 0.5 * x * (1.0 + jnp.tanh(c * (x + 0.044715 * x * x * x)))


# --------------------------------------------------------------------------------------
# Fused QKV projection: one GEMM over the concatenated (D, 3D) weight, three outputs
# --------------------------------------------------------------------------------------
def _qkv_proj_kernel(x_ref, w_ref, b_ref, q_ref, k_ref, v_ref, *, d):
    acc = jnp.dot(x_ref[...].astype(_MXU_DTYPE), w_ref[...],
                  preferred_element_type=jnp.float32)
    acc = acc + b_ref[...]
    q_ref[...] = acc[:, :d].astype(q_ref.dtype)
    k_ref[...] = acc[:, d:2 * d].astype(k_ref.dtype)
    v_ref[...] = acc[:, 2 * d:].astype(v_ref.dtype)


def qkv_proj(x, w_qkv, b_qkv, out_dtype):
    M, K = x.shape
    three_d = w_qkv.shape[1]
    d = three_d // 3
    tm, Mp = _row_tiling(M)
    x_p = _pad_rows(x, Mp)
    kern = functools.partial(_qkv_proj_kernel, d=d)
    q, k, v = pl.pallas_call(
        kern,
        out_shape=[jax.ShapeDtypeStruct((Mp, d), out_dtype)] * 3,
        grid=(Mp // tm,),
        in_specs=[
            pl.BlockSpec((tm, K), lambda i: (i, 0)),
            pl.BlockSpec((K, three_d), lambda i: (0, 0)),
            pl.BlockSpec((1, three_d), lambda i: (0, 0)),
        ],
        out_specs=[pl.BlockSpec((tm, d), lambda i: (i, 0))] * 3,
        compiler_params=pltpu.CompilerParams(
            dimension_semantics=("parallel",), vmem_limit_bytes=_VMEM_LIMIT),
    )(x_p, w_qkv, b_qkv.reshape(1, three_d))
    if Mp != M:
        q, k, v = q[:M], k[:M], v[:M]
    return q, k, v


# --------------------------------------------------------------------------------------
# Fused GEMM + bias + GELU (FFN first matmul)
# --------------------------------------------------------------------------------------
def _matmul_bias_gelu_kernel(x_ref, w_ref, b_ref, o_ref):
    acc = jnp.dot(x_ref[...].astype(_MXU_DTYPE), w_ref[...],
                  preferred_element_type=jnp.float32)
    o_ref[...] = _gelu_tanh(acc + b_ref[...]).astype(o_ref.dtype)


def matmul_bias_gelu(x, w, b, out_dtype):
    M, K = x.shape
    N = w.shape[1]
    tm, Mp = _row_tiling(M)
    x_p = _pad_rows(x, Mp)
    out = pl.pallas_call(
        _matmul_bias_gelu_kernel,
        out_shape=jax.ShapeDtypeStruct((Mp, N), out_dtype),
        grid=(Mp // tm,),
        in_specs=[
            pl.BlockSpec((tm, K), lambda i: (i, 0)),
            pl.BlockSpec((K, N), lambda i: (0, 0)),
            pl.BlockSpec((1, N), lambda i: (0, 0)),
        ],
        out_specs=pl.BlockSpec((tm, N), lambda i: (i, 0)),
        compiler_params=pltpu.CompilerParams(
            dimension_semantics=("parallel",), vmem_limit_bytes=_VMEM_LIMIT),
    )(x_p, w, b.reshape(1, N))
    return out[:M] if Mp != M else out


# --------------------------------------------------------------------------------------
# Fused GEMM + bias + residual add + LayerNorm (out-proj and FFN second matmul)
# --------------------------------------------------------------------------------------
def _matmul_bias_res_ln_kernel(x_ref, w_ref, b_ref, res_ref, g_ref, beta_ref, o_ref, *, eps):
    acc = jnp.dot(x_ref[...].astype(_MXU_DTYPE), w_ref[...],
                  preferred_element_type=jnp.float32)
    y = acc + b_ref[...] + res_ref[...].astype(jnp.float32)
    mean = jnp.mean(y, axis=-1, keepdims=True)
    var = jnp.mean(jnp.square(y - mean), axis=-1, keepdims=True)
    inv = jax.lax.rsqrt(var + eps)
    o_ref[...] = ((y - mean) * inv * g_ref[...] + beta_ref[...]).astype(o_ref.dtype)


def matmul_bias_res_ln(x, w, b, res, gamma, beta, out_dtype, eps=1e-12):
    M, K = x.shape
    N = w.shape[1]
    tm, Mp = _row_tiling(M)
    x_p = _pad_rows(x, Mp)
    res_p = _pad_rows(res, Mp)
    kern = functools.partial(_matmul_bias_res_ln_kernel, eps=eps)
    out = pl.pallas_call(
        kern,
        out_shape=jax.ShapeDtypeStruct((Mp, N), out_dtype),
        grid=(Mp // tm,),
        in_specs=[
            pl.BlockSpec((tm, K), lambda i: (i, 0)),
            pl.BlockSpec((K, N), lambda i: (0, 0)),
            pl.BlockSpec((1, N), lambda i: (0, 0)),
            pl.BlockSpec((tm, N), lambda i: (i, 0)),
            pl.BlockSpec((1, N), lambda i: (0, 0)),
            pl.BlockSpec((1, N), lambda i: (0, 0)),
        ],
        out_specs=pl.BlockSpec((tm, N), lambda i: (i, 0)),
        compiler_params=pltpu.CompilerParams(
            dimension_semantics=("parallel",), vmem_limit_bytes=_VMEM_LIMIT),
    )(x_p, w, b.reshape(1, N), res_p, gamma.reshape(1, N), beta.reshape(1, N))
    return out[:M] if Mp != M else out


# --------------------------------------------------------------------------------------
# Attention, encoder-scale restructure: the WHOLE padded key/value sequence is one block,
# so softmax is a single in-register pass per head (no online-softmax scratch, no alpha
# rescale, no per-kv-step partial stores).  Grid = (batch, q-tiles), both "parallel"
# (keeps both v7x TensorCores busy whenever B * num_q >= 2).
# 1/sqrt(Dh) is pre-folded into Wq/bq, so no in-kernel scaling is needed.
# K/V slab for e.g. L=512, D=768 bf16 is ~1.5 MiB/block — trivially fits VMEM.
# TODO(synk): for decoder-scale sequences (L >> 2K) reintroduce a KV-tiled online-softmax
# path; out of scope for this sentence-encoder module.
# --------------------------------------------------------------------------------------
def _flash_attn_kernel(q_ref, k_ref, v_ref, bias_ref, o_ref, *, num_heads, head_dim):
    q = q_ref[0]                          # (Tq, D) bf16
    k = k_ref[0]                          # (Lk, D) bf16
    v = v_ref[0]                          # (Lk, D) bf16
    tq = q.shape[0]
    lk = k.shape[0]
    # Hoist the pad-mask bias broadcast out of the head loop (JAX does not CSE it).
    bias = jnp.broadcast_to(bias_ref[0], (tq, lk)).astype(jnp.float32)

    outs = []
    for h in range(num_heads):
        sl = slice(h * head_dim, (h + 1) * head_dim)
        q_h = q[:, sl]
        k_h = k[:, sl]
        s = jax.lax.dot_general(q_h, k_h, (((1,), (1,)), ((), ())),
                                preferred_element_type=jnp.float32)    # (Tq, Lk)
        s = s + bias
        m = jnp.max(s, axis=-1, keepdims=True)                          # (Tq, 1)
        p = jnp.exp(s - m)
        l = jnp.sum(p, axis=-1, keepdims=True)
        o_h = jnp.dot(p.astype(_MXU_DTYPE), v[:, sl],
                      preferred_element_type=jnp.float32)               # (Tq, Dh)
        outs.append(o_h * pl.reciprocal(l, approx=True))
    # Assemble once and write a single lane-dense (Tq, D) store.
    o_ref[0] = jnp.concatenate(outs, axis=-1).astype(o_ref.dtype)


def flash_attention(q, k, v, mask_bias, num_heads, block_q=256):
    """q,k,v: (B, L, D=H*Dh) bf16; mask_bias: (B, 1, L) additive (0 valid / -1e9 pad)."""
    B, L, D = q.shape
    head_dim = D // num_heads
    Lk = _round_up(L, 8)                          # full (padded) KV length = one block
    Tq = min(block_q, Lk)
    Lq = _round_up(L, Tq)
    if Lq != L:
        q = jnp.pad(q, ((0, 0), (0, Lq - L), (0, 0)))
    if Lk != L:
        k = jnp.pad(k, ((0, 0), (0, Lk - L), (0, 0)))
        v = jnp.pad(v, ((0, 0), (0, Lk - L), (0, 0)))
        mask_bias = jnp.pad(mask_bias, ((0, 0), (0, 0), (0, Lk - L)),
                            constant_values=-1e9)
    num_q = Lq // Tq

    kern = functools.partial(_flash_attn_kernel, num_heads=num_heads, head_dim=head_dim)
    out = pl.pallas_call(
        kern,
        out_shape=jax.ShapeDtypeStruct((B, Lq, D), q.dtype),
        grid=(B, num_q),
        in_specs=[
            pl.BlockSpec((1, Tq, D), lambda b, qi: (b, qi, 0)),
            pl.BlockSpec((1, Lk, D), lambda b, qi: (b, 0, 0)),
            pl.BlockSpec((1, Lk, D), lambda b, qi: (b, 0, 0)),
            pl.BlockSpec((1, 1, Lk), lambda b, qi: (b, 0, 0)),
        ],
        out_specs=pl.BlockSpec((1, Tq, D), lambda b, qi: (b, qi, 0)),
        compiler_params=pltpu.CompilerParams(
            dimension_semantics=("parallel", "parallel"),
            vmem_limit_bytes=_VMEM_LIMIT),
    )(q, k, v, mask_bias)
    if Lq != L:
        out = out[:, :L, :]
    return out


# --------------------------------------------------------------------------------------
# BERT encoder layer / stack (post-LN, as in BertEncoder).  Residual stream kept in bf16
# between kernels; all reductions (softmax, LayerNorm) and accumulations are f32.
# --------------------------------------------------------------------------------------
def bert_layer(x, mask_bias, p, num_heads):
    B, L, D = x.shape
    x2 = x.reshape(B * L, D)

    # fused QKV projection (scale folded into Wq/bq; bf16 activations for attention)
    q, k, v = qkv_proj(x2, p["w_qkv"], p["b_qkv"], out_dtype=_MXU_DTYPE)
    q = q.reshape(B, L, D)
    k = k.reshape(B, L, D)
    v = v.reshape(B, L, D)

    ctx = flash_attention(q, k, v, mask_bias, num_heads)        # (B, L, D)
    ctx2 = ctx.reshape(B * L, D)

    # out-proj + bias + residual + LayerNorm, all in one kernel (dropout=identity, eval)
    x_attn = matmul_bias_res_ln(ctx2, p["wo"], p["bo"], x2,
                                p["ln1_g"], p["ln1_b"], out_dtype=_MXU_DTYPE)

    # FFN: (dense + bias + GELU) then (dense + bias + residual + LayerNorm)
    h = matmul_bias_gelu(x_attn, p["w1"], p["b1"], out_dtype=_MXU_DTYPE)
    out = matmul_bias_res_ln(h, p["w2"], p["b2"], x_attn,
                             p["ln2_g"], p["ln2_b"], out_dtype=_MXU_DTYPE)
    return out.reshape(B, L, D)


def flash_att_encoder(batch_embedding, batch_pad_mask, params, num_heads):
    """batch_embedding: [B, L, D]; batch_pad_mask: [B, L] True = not padding."""
    B, L, D = batch_embedding.shape
    if batch_pad_mask is None:
        batch_pad_mask = jnp.ones((B, L), dtype=bool)
    mask_bias = jnp.where(batch_pad_mask, 0.0, -1e9).astype(jnp.float32).reshape(B, 1, L)
    x = batch_embedding.astype(_MXU_DTYPE)   # bf16 residual stream between kernels
    for p in params:
        x = bert_layer(x, mask_bias, p, num_heads)
    # TODO(synk): attention-score list is never returned by the PyTorch forward, so only
    # x_seq is produced here.
    return x.astype(batch_embedding.dtype)


# --------------------------------------------------------------------------------------
# Parameters: PyTorch-style raw init + one-time prep (fuse QKV, fold 1/sqrt(Dh) into
# Wq/bq, cast matmul weights to bf16 for the MXU; biases / LN params stay f32).
# --------------------------------------------------------------------------------------
def init_params(key, embed_dim, hidden_dim, num_layers):
    std = 0.02
    params = []
    for l in range(num_layers):
        ks = jax.random.split(jax.random.fold_in(key, l), 6)
        layer = {
            "wq": jax.random.normal(ks[0], (embed_dim, embed_dim), jnp.float32) * std,
            "bq": jnp.zeros((embed_dim,), jnp.float32),
            "wk": jax.random.normal(ks[1], (embed_dim, embed_dim), jnp.float32) * std,
            "bk": jnp.zeros((embed_dim,), jnp.float32),
            "wv": jax.random.normal(ks[2], (embed_dim, embed_dim), jnp.float32) * std,
            "bv": jnp.zeros((embed_dim,), jnp.float32),
            "wo": jax.random.normal(ks[3], (embed_dim, embed_dim), jnp.float32) * std,
            "bo": jnp.zeros((embed_dim,), jnp.float32),
            "w1": jax.random.normal(ks[4], (embed_dim, hidden_dim), jnp.float32) * std,
            "b1": jnp.zeros((hidden_dim,), jnp.float32),
            "w2": jax.random.normal(ks[5], (hidden_dim, embed_dim), jnp.float32) * std,
            "b2": jnp.zeros((embed_dim,), jnp.float32),
            "ln1_g": jnp.ones((embed_dim,), jnp.float32),
            "ln1_b": jnp.zeros((embed_dim,), jnp.float32),
            "ln2_g": jnp.ones((embed_dim,), jnp.float32),
            "ln2_b": jnp.zeros((embed_dim,), jnp.float32),
        }
        params.append(layer)
    return params


def prepare_params(raw_params, embed_dim, num_heads, mxu_dtype=_MXU_DTYPE):
    head_dim = embed_dim // num_heads
    scale = 1.0 / math.sqrt(head_dim)
    prepared = []
    for p in raw_params:
        w_qkv = jnp.concatenate([p["wq"] * scale, p["wk"], p["wv"]], axis=1)
        b_qkv = jnp.concatenate([p["bq"] * scale, p["bk"], p["bv"]], axis=0)
        prepared.append({
            "w_qkv": w_qkv.astype(mxu_dtype),
            "b_qkv": b_qkv.astype(jnp.float32),
            "wo": p["wo"].astype(mxu_dtype), "bo": p["bo"].astype(jnp.float32),
            "w1": p["w1"].astype(mxu_dtype), "b1": p["b1"].astype(jnp.float32),
            "w2": p["w2"].astype(mxu_dtype), "b2": p["b2"].astype(jnp.float32),
            "ln1_g": p["ln1_g"], "ln1_b": p["ln1_b"],
            "ln2_g": p["ln2_g"], "ln2_b": p["ln2_b"],
        })
    return prepared


if __name__ == "__main__":
    # small config consistent with the module: embed_dim=32, num_heads=4,
    # hidden_dim(intermediate)=64, trans_layer=2; batch=2, seq len=8
    B, L = 2, 8
    embed_dim, num_heads, hidden_dim, trans_layer = 32, 4, 64, 2

    key = jax.random.PRNGKey(0)
    k_x, k_p = jax.random.split(key)
    batch_embedding = jax.random.normal(k_x, (B, L, embed_dim), jnp.float32)
    batch_pad_mask = jnp.array(
        [[True] * L, [True] * (L - 2) + [False] * 2], dtype=bool)

    raw_params = init_params(k_p, embed_dim, hidden_dim, trans_layer)
    params = prepare_params(raw_params, embed_dim, num_heads)

    fwd = jax.jit(functools.partial(flash_att_encoder, num_heads=num_heads))
    x_seq = fwd(batch_embedding, batch_pad_mask, params)
    jax.block_until_ready(x_seq)

    assert x_seq.shape == (B, L, embed_dim)
    assert jnp.all(jnp.isfinite(x_seq))
    print("KERNEL_OK")
</pallas_src>

<mosaic_0001>
module attributes {stable_mosaic.version = 11 : i64} {
  func.func @_flash_attn_kernel(%arg0: i32, %arg1: i32, %arg2: memref<1x8x32xbf16, #tpu.memory_space<vmem>>, %arg3: memref<1x8x32xbf16, #tpu.memory_space<vmem>>, %arg4: memref<1x8x32xbf16, #tpu.memory_space<vmem>>, %arg5: memref<1x1x8xf32, #tpu.memory_space<vmem>>, %arg6: memref<1x8x32xbf16, #tpu.memory_space<vmem>>) attributes {dimension_semantics = [#tpu.dimension_semantics<parallel>, #tpu.dimension_semantics<parallel>], iteration_bounds = array<i64: 2, 1>, scalar_prefetch = 0 : i64, scratch_operands = 0 : i64, tpu.core_type = #tpu.core_type<tc>, window_params = [{transform_indices = @transform_0, window_bounds = array<i64: 1, 8, 32>}, {transform_indices = @transform_1, window_bounds = array<i64: 1, 8, 32>}, {transform_indices = @transform_2, window_bounds = array<i64: 1, 8, 32>}, {transform_indices = @transform_3, window_bounds = array<i64: 1, 1, 8>}, {transform_indices = @transform_4, window_bounds = array<i64: 1, 8, 32>}]} {
    %c0 = arith.constant 0 : index
    %c0_0 = arith.constant 0 : index
    %c0_1 = arith.constant 0 : index
    %0 = vector.load %arg2[%c0, %c0_0, %c0_1] : memref<1x8x32xbf16, #tpu.memory_space<vmem>>, vector<1x8x32xbf16>
    %1 = vector.shape_cast %0 : vector<1x8x32xbf16> to vector<8x32xbf16>
    %c0_2 = arith.constant 0 : index
    %c0_3 = arith.constant 0 : index
    %c0_4 = arith.constant 0 : index
    %2 = vector.load %arg3[%c0_2, %c0_3, %c0_4] : memref<1x8x32xbf16, #tpu.memory_space<vmem>>, vector<1x8x32xbf16>
    %3 = vector.shape_cast %2 : vector<1x8x32xbf16> to vector<8x32xbf16>
    %c0_5 = arith.constant 0 : index
    %c0_6 = arith.constant 0 : index
    %c0_7 = arith.constant 0 : index
    %4 = vector.load %arg4[%c0_5, %c0_6, %c0_7] : memref<1x8x32xbf16, #tpu.memory_space<vmem>>, vector<1x8x32xbf16>
    %5 = vector.shape_cast %4 : vector<1x8x32xbf16> to vector<8x32xbf16>
    %c0_8 = arith.constant 0 : index
    %c0_9 = arith.constant 0 : index
    %c0_10 = arith.constant 0 : index
    %6 = vector.load %arg5[%c0_8, %c0_9, %c0_10] : memref<1x1x8xf32, #tpu.memory_space<vmem>>, vector<1x1x8xf32>
    %7 = vector.shape_cast %6 : vector<1x1x8xf32> to vector<1x8xf32>
    %8 = vector.shape_cast %7 : vector<1x8xf32> to vector<1x8xf32>
    %9 = vector.broadcast %8 : vector<1x8xf32> to vector<8x8xf32>
    %10 = vector.extract_strided_slice %1 {offsets = [0, 0], sizes = [8, 8], strides = [1, 1]} : vector<8x32xbf16> to vector<8x8xbf16>
    %11 = vector.extract_strided_slice %3 {offsets = [0, 0], sizes = [8, 8], strides = [1, 1]} : vector<8x32xbf16> to vector<8x8xbf16>
    %cst = arith.constant dense<0.000000e+00> : vector<8x8xf32>
    %12 = tpu.matmul %10, %11, %cst {dimension_numbers = #tpu.dot_dimension_numbers<[1], [1], [0], [0], [0, 0, 1, 0], [], []>} : vector<8x8xbf16>, vector<8x8xbf16>, vector<8x8xf32> -> vector<8x8xf32>
    %13 = arith.addf %12, %9 : vector<8x8xf32>
    %cst_11 = arith.constant dense<0xFF800000> : vector<8xf32>
    %14 = vector.multi_reduction <maximumf>, %13, %cst_11 [1] : vector<8x8xf32> to vector<8xf32>
    %15 = vector.shape_cast %14 : vector<8xf32> to vector<8x1xf32>
    %16 = vector.broadcast %15 : vector<8x1xf32> to vector<8x8xf32>
    %17 = arith.subf %13, %16 : vector<8x8xf32>
    %18 = math.exp %17 : vector<8x8xf32>
    %cst_12 = arith.constant dense<0.000000e+00> : vector<8xf32>
    %19 = vector.multi_reduction <add>, %18, %cst_12 [1] : vector<8x8xf32> to vector<8xf32>
    %20 = vector.shape_cast %19 : vector<8xf32> to vector<8x1xf32>
    %21 = arith.truncf %18 : vector<8x8xf32> to vector<8x8xbf16>
    %22 = vector.extract_strided_slice %5 {offsets = [0, 0], sizes = [8, 8], strides = [1, 1]} : vector<8x32xbf16> to vector<8x8xbf16>
    %cst_13 = arith.constant dense<0.000000e+00> : vector<8x8xf32>
    %23 = tpu.matmul %21, %22, %cst_13 {dimension_numbers = #tpu.dot_dimension_numbers<[1], [0], [0], [1], [0, 0, 1, 1], [], []>} : vector<8x8xbf16>, vector<8x8xbf16>, vector<8x8xf32> -> vector<8x8xf32>
    %24 = tpu.reciprocal %20 {approx = true} : vector<8x1xf32> -> vector<8x1xf32>
    %25 = vector.broadcast %24 : vector<8x1xf32> to vector<8x8xf32>
    %26 = arith.mulf %23, %25 : vector<8x8xf32>
    %27 = vector.extract_strided_slice %1 {offsets = [0, 8], sizes = [8, 8], strides = [1, 1]} : vector<8x32xbf16> to vector<8x8xbf16>
    %28 = vector.extract_strided_slice %3 {offsets = [0, 8], sizes = [8, 8], strides = [1, 1]} : vector<8x32xbf16> to vector<8x8xbf16>
    %cst_14 = arith.constant dense<0.000000e+00> : vector<8x8xf32>
    %29 = tpu.matmul %27, %28, %cst_14 {dimension_numbers = #tpu.dot_dimension_numbers<[1], [1], [0], [0], [0, 0, 1, 0], [], []>} : vector<8x8xbf16>, vector<8x8xbf16>, vector<8x8xf32> -> vector<8x8xf32>
    %30 = arith.addf %29, %9 : vector<8x8xf32>
    %cst_15 = arith.constant dense<0xFF800000> : vector<8xf32>
    %31 = vector.multi_reduction <maximumf>, %30, %cst_15 [1] : vector<8x8xf32> to vector<8xf32>
    %32 = vector.shape_cast %31 : vector<8xf32> to vector<8x1xf32>
    %33 = vector.broadcast %32 : vector<8x1xf32> to vector<8x8xf32>
    %34 = arith.subf %30, %33 : vector<8x8xf32>
    %35 = math.exp %34 : vector<8x8xf32>
    %cst_16 = arith.constant dense<0.000000e+00> : vector<8xf32>
    %36 = vector.multi_reduction <add>, %35, %cst_16 [1] : vector<8x8xf32> to vector<8xf32>
    %37 = vector.shape_cast %36 : vector<8xf32> to vector<8x1xf32>
    %38 = arith.truncf %35 : vector<8x8xf32> to vector<8x8xbf16>
    %39 = vector.extract_strided_slice %5 {offsets = [0, 8], sizes = [8, 8], strides = [1, 1]} : vector<8x32xbf16> to vector<8x8xbf16>
    %cst_17 = arith.constant dense<0.000000e+00> : vector<8x8xf32>
    %40 = tpu.matmul %38, %39, %cst_17 {dimension_numbers = #tpu.dot_dimension_numbers<[1], [0], [0], [1], [0, 0, 1, 1], [], []>} : vector<8x8xbf16>, vector<8x8xbf16>, vector<8x8xf32> -> vector<8x8xf32>
    %41 = tpu.reciprocal %37 {approx = true} : vector<8x1xf32> -> vector<8x1xf32>
    %42 = vector.broadcast %41 : vector<8x1xf32> to vector<8x8xf32>
    %43 = arith.mulf %40, %42 : vector<8x8xf32>
    %44 = vector.extract_strided_slice %1 {offsets = [0, 16], sizes = [8, 8], strides = [1, 1]} : vector<8x32xbf16> to vector<8x8xbf16>
    %45 = vector.extract_strided_slice %3 {offsets = [0, 16], sizes = [8, 8], strides = [1, 1]} : vector<8x32xbf16> to vector<8x8xbf16>
    %cst_18 = arith.constant dense<0.000000e+00> : vector<8x8xf32>
    %46 = tpu.matmul %44, %45, %cst_18 {dimension_numbers = #tpu.dot_dimension_numbers<[1], [1], [0], [0], [0, 0, 1, 0], [], []>} : vector<8x8xbf16>, vector<8x8xbf16>, vector<8x8xf32> -> vector<8x8xf32>
    %47 = arith.addf %46, %9 : vector<8x8xf32>
    %cst_19 = arith.constant dense<0xFF800000> : vector<8xf32>
    %48 = vector.multi_reduction <maximumf>, %47, %cst_19 [1] : vector<8x8xf32> to vector<8xf32>
    %49 = vector.shape_cast %48 : vector<8xf32> to vector<8x1xf32>
    %50 = vector.broadcast %49 : vector<8x1xf32> to vector<8x8xf32>
    %51 = arith.subf %47, %50 : vector<8x8xf32>
    %52 = math.exp %51 : vector<8x8xf32>
    %cst_20 = arith.constant dense<0.000000e+00> : vector<8xf32>
    %53 = vector.multi_reduction <add>, %52, %cst_20 [1] : vector<8x8xf32> to vector<8xf32>
    %54 = vector.shape_cast %53 : vector<8xf32> to vector<8x1xf32>
    %55 = arith.truncf %52 : vector<8x8xf32> to vector<8x8xbf16>
    %56 = vector.extract_strided_slice %5 {offsets = [0, 16], sizes = [8, 8], strides = [1, 1]} : vector<8x32xbf16> to vector<8x8xbf16>
    %cst_21 = arith.constant dense<0.000000e+00> : vector<8x8xf32>
    %57 = tpu.matmul %55, %56, %cst_21 {dimension_numbers = #tpu.dot_dimension_numbers<[1], [0], [0], [1], [0, 0, 1, 1], [], []>} : vector<8x8xbf16>, vector<8x8xbf16>, vector<8x8xf32> -> vector<8x8xf32>
    %58 = tpu.reciprocal %54 {approx = true} : vector<8x1xf32> -> vector<8x1xf32>
    %59 = vector.broadcast %58 : vector<8x1xf32> to vector<8x8xf32>
    %60 = arith.mulf %57, %59 : vector<8x8xf32>
    %61 = vector.extract_strided_slice %1 {offsets = [0, 24], sizes = [8, 8], strides = [1, 1]} : vector<8x32xbf16> to vector<8x8xbf16>
    %62 = vector.extract_strided_slice %3 {offsets = [0, 24], sizes = [8, 8], strides = [1, 1]} : vector<8x32xbf16> to vector<8x8xbf16>
    %cst_22 = arith.constant dense<0.000000e+00> : vector<8x8xf32>
    %63 = tpu.matmul %61, %62, %cst_22 {dimension_numbers = #tpu.dot_dimension_numbers<[1], [1], [0], [0], [0, 0, 1, 0], [], []>} : vector<8x8xbf16>, vector<8x8xbf16>, vector<8x8xf32> -> vector<8x8xf32>
    %64 = arith.addf %63, %9 : vector<8x8xf32>
    %cst_23 = arith.constant dense<0xFF800000> : vector<8xf32>
    %65 = vector.multi_reduction <maximumf>, %64, %cst_23 [1] : vector<8x8xf32> to vector<8xf32>
    %66 = vector.shape_cast %65 : vector<8xf32> to vector<8x1xf32>
    %67 = vector.broadcast %66 : vector<8x1xf32> to vector<8x8xf32>
    %68 = arith.subf %64, %67 : vector<8x8xf32>
    %69 = math.exp %68 : vector<8x8xf32>
    %cst_24 = arith.constant dense<0.000000e+00> : vector<8xf32>
    %70 = vector.multi_reduction <add>, %69, %cst_24 [1] : vector<8x8xf32> to vector<8xf32>
    %71 = vector.shape_cast %70 : vector<8xf32> to vector<8x1xf32>
    %72 = arith.truncf %69 : vector<8x8xf32> to vector<8x8xbf16>
    %73 = vector.extract_strided_slice %5 {offsets = [0, 24], sizes = [8, 8], strides = [1, 1]} : vector<8x32xbf16> to vector<8x8xbf16>
    %cst_25 = arith.constant dense<0.000000e+00> : vector<8x8xf32>
    %74 = tpu.matmul %72, %73, %cst_25 {dimension_numbers = #tpu.dot_dimension_numbers<[1], [0], [0], [1], [0, 0, 1, 1], [], []>} : vector<8x8xbf16>, vector<8x8xbf16>, vector<8x8xf32> -> vector<8x8xf32>
    %75 = tpu.reciprocal %71 {approx = true} : vector<8x1xf32> -> vector<8x1xf32>
    %76 = vector.broadcast %75 : vector<8x1xf32> to vector<8x8xf32>
    %77 = arith.mulf %74, %76 : vector<8x8xf32>
    %78 = tpu.concatenate %26, %43, %60, %77 in 1 : vector<8x8xf32>, vector<8x8xf32>, vector<8x8xf32>, vector<8x8xf32> -> vector<8x32xf32>
    %79 = arith.truncf %78 : vector<8x32xf32> to vector<8x32xbf16>
    %c0_26 = arith.constant 0 : index
    %c0_27 = arith.constant 0 : index
    %c0_28 = arith.constant 0 : index
    %80 = vector.load %arg6[%c0_26, %c0_27, %c0_28] : memref<1x8x32xbf16, #tpu.memory_space<vmem>>, vector<1x8x32xbf16>
    %81 = vector.shape_cast %80 : vector<1x8x32xbf16> to vector<8x32xbf16>
    %82 = vector.shape_cast %79 : vector<8x32xbf16> to vector<1x8x32xbf16>
    tpu.vector_store %arg6[%c0_26, %c0_27, %c0_28], %82 {strides = array<i32>} : memref<1x8x32xbf16, #tpu.memory_space<vmem>>, vector<1x8x32xbf16>,
    return
  }
  func.func @transform_0(%arg0: i32, %arg1: i32) -> (i32, i32, i32) {
    %c0_i32 = arith.constant 0 : i32
    %c0_i32_0 = arith.constant 0 : i32
    return %arg0, %arg1, %c0_i32 : i32, i32, i32
  }
  func.func @transform_1(%arg0: i32, %arg1: i32) -> (i32, i32, i32) {
    %c0_i32 = arith.constant 0 : i32
    %c0_i32_0 = arith.constant 0 : i32
    %c0_i32_1 = arith.constant 0 : i32
    return %arg0, %c0_i32, %c0_i32_0 : i32, i32, i32
  }
  func.func @transform_2(%arg0: i32, %arg1: i32) -> (i32, i32, i32) {
    %c0_i32 = arith.constant 0 : i32
    %c0_i32_0 = arith.constant 0 : i32
    %c0_i32_1 = arith.constant 0 : i32
    return %arg0, %c0_i32, %c0_i32_0 : i32, i32, i32
  }
  func.func @transform_3(%arg0: i32, %arg1: i32) -> (i32, i32, i32) {
    %c0_i32 = arith.constant 0 : i32
    %c0_i32_0 = arith.constant 0 : i32
    %c0_i32_1 = arith.constant 0 : i32
    return %arg0, %c0_i32, %c0_i32_0 : i32, i32, i32
  }
  func.func @transform_4(%arg0: i32, %arg1: i32) -> (i32, i32, i32) {
    %c0_i32 = arith.constant 0 : i32
    %c0_i32_0 = arith.constant 0 : i32
    return %arg0, %arg1, %c0_i32 : i32, i32, i32
  }
}

module attributes {stable_mosaic.version = 11 : i64} {
  func.func @_qkv_proj_kernel(%arg0: i32, %arg1: memref<16x32xbf16, #tpu.memory_space<vmem>>, %arg2: memref<32x96xbf16, #tpu.memory_space<vmem>>, %arg3: memref<1x96xf32, #tpu.memory_space<vmem>>, %arg4: memref<16x32xbf16, #tpu.memory_space<vmem>>, %arg5: memref<16x32xbf16, #tpu.memory_space<vmem>>, %arg6: memref<16x32xbf16, #tpu.memory_space<vmem>>) attributes {dimension_semantics = [#tpu.dimension_semantics<parallel>], iteration_bounds = array<i64: 1>, scalar_prefetch = 0 : i64, scratch_operands = 0 : i64, tpu.core_type = #tpu.core_type<tc>, window_params = [{transform_indices = @transform_0, window_bounds = array<i64: 16, 32>}, {pipeline_mode = #tpu.pipeline_mode<synchronous>, transform_indices = @transform_1, window_bounds = array<i64: 32, 96>}, {pipeline_mode = #tpu.pipeline_mode<synchronous>, transform_indices = @transform_2, window_bounds = array<i64: 1, 96>}, {transform_indices = @transform_3, window_bounds = array<i64: 16, 32>}, {transform_indices = @transform_4, window_bounds = array<i64: 16, 32>}, {transform_indices = @transform_5, window_bounds = array<i64: 16, 32>}]} {
    %c0 = arith.constant 0 : index
    %c0_0 = arith.constant 0 : index
    %0 = vector.load %arg1[%c0, %c0_0] : memref<16x32xbf16, #tpu.memory_space<vmem>>, vector<16x32xbf16>
    %c0_1 = arith.constant 0 : index
    %c0_2 = arith.constant 0 : index
    %1 = vector.load %arg2[%c0_1, %c0_2] : memref<32x96xbf16, #tpu.memory_space<vmem>>, vector<32x96xbf16>
    %cst = arith.constant dense<0.000000e+00> : vector<16x96xf32>
    %2 = tpu.matmul %0, %1, %cst {dimension_numbers = #tpu.dot_dimension_numbers<[1], [0], [0], [1], [0, 0, 1, 1], [], []>} : vector<16x32xbf16>, vector<32x96xbf16>, vector<16x96xf32> -> vector<16x96xf32>
    %c0_3 = arith.constant 0 : index
    %c0_4 = arith.constant 0 : index
    %3 = vector.load %arg3[%c0_3, %c0_4] : memref<1x96xf32, #tpu.memory_space<vmem>>, vector<1x96xf32>
    %4 = vector.broadcast %3 : vector<1x96xf32> to vector<16x96xf32>
    %5 = arith.addf %2, %4 : vector<16x96xf32>
    %6 = vector.extract_strided_slice %5 {offsets = [0, 0], sizes = [16, 32], strides = [1, 1]} : vector<16x96xf32> to vector<16x32xf32>
    %7 = arith.truncf %6 : vector<16x32xf32> to vector<16x32xbf16>
    %c0_5 = arith.constant 0 : index
    %c0_6 = arith.constant 0 : index
    %8 = vector.load %arg4[%c0_5, %c0_6] : memref<16x32xbf16, #tpu.memory_space<vmem>>, vector<16x32xbf16>
    tpu.vector_store %arg4[%c0_5, %c0_6], %7 {strides = array<i32>} : memref<16x32xbf16, #tpu.memory_space<vmem>>, vector<16x32xbf16>,
    %9 = vector.extract_strided_slice %5 {offsets = [0, 32], sizes = [16, 32], strides = [1, 1]} : vector<16x96xf32> to vector<16x32xf32>
    %10 = arith.truncf %9 : vector<16x32xf32> to vector<16x32xbf16>
    %c0_7 = arith.constant 0 : index
    %c0_8 = arith.constant 0 : index
    %11 = vector.load %arg5[%c0_7, %c0_8] : memref<16x32xbf16, #tpu.memory_space<vmem>>, vector<16x32xbf16>
    tpu.vector_store %arg5[%c0_7, %c0_8], %10 {strides = array<i32>} : memref<16x32xbf16, #tpu.memory_space<vmem>>, vector<16x32xbf16>,
    %12 = vector.extract_strided_slice %5 {offsets = [0, 64], sizes = [16, 32], strides = [1, 1]} : vector<16x96xf32> to vector<16x32xf32>
    %13 = arith.truncf %12 : vector<16x32xf32> to vector<16x32xbf16>
    %c0_9 = arith.constant 0 : index
    %c0_10 = arith.constant 0 : index
    %14 = vector.load %arg6[%c0_9, %c0_10] : memref<16x32xbf16, #tpu.memory_space<vmem>>, vector<16x32xbf16>
    tpu.vector_store %arg6[%c0_9, %c0_10], %13 {strides = array<i32>} : memref<16x32xbf16, #tpu.memory_space<vmem>>, vector<16x32xbf16>,
    return
  }
  func.func @transform_0(%arg0: i32) -> (i32, i32) {
    %c0_i32 = arith.constant 0 : i32
    %c0_i32_0 = arith.constant 0 : i32
    return %arg0, %c0_i32 : i32, i32
  }
  func.func @transform_1(%arg0: i32) -> (i32, i32) {
    %c0_i32 = arith.constant 0 : i32
    %c0_i32_0 = arith.constant 0 : i32
    %c0_i32_1 = arith.constant 0 : i32
    return %c0_i32, %c0_i32_0 : i32, i32
  }
  func.func @transform_2(%arg0: i32) -> (i32, i32) {
    %c0_i32 = arith.constant 0 : i32
    %c0_i32_0 = arith.constant 0 : i32
    %c0_i32_1 = arith.constant 0 : i32
    return %c0_i32, %c0_i32_0 : i32, i32
  }
  func.func @transform_3(%arg0: i32) -> (i32, i32) {
    %c0_i32 = arith.constant 0 : i32
    %c0_i32_0 = arith.constant 0 : i32
    return %arg0, %c0_i32 : i32, i32
  }
  func.func @transform_4(%arg0: i32) -> (i32, i32) {
    %c0_i32 = arith.constant 0 : i32
    %c0_i32_0 = arith.constant 0 : i32
    return %arg0, %c0_i32 : i32, i32
  }
  func.func @transform_5(%arg0: i32) -> (i32, i32) {
    %c0_i32 = arith.constant 0 : i32
    %c0_i32_0 = arith.constant 0 : i32
    return %arg0, %c0_i32 : i32, i32
  }
}

module attributes {stable_mosaic.version = 11 : i64} {
  func.func @_matmul_bias_gelu_kernel(%arg0: i32, %arg1: memref<16x32xbf16, #tpu.memory_space<vmem>>, %arg2: memref<32x64xbf16, #tpu.memory_space<vmem>>, %arg3: memref<1x64xf32, #tpu.memory_space<vmem>>, %arg4: memref<16x64xbf16, #tpu.memory_space<vmem>>) attributes {dimension_semantics = [#tpu.dimension_semantics<parallel>], iteration_bounds = array<i64: 1>, scalar_prefetch = 0 : i64, scratch_operands = 0 : i64, tpu.core_type = #tpu.core_type<tc>, window_params = [{transform_indices = @transform_0, window_bounds = array<i64: 16, 32>}, {pipeline_mode = #tpu.pipeline_mode<synchronous>, transform_indices = @transform_1, window_bounds = array<i64: 32, 64>}, {pipeline_mode = #tpu.pipeline_mode<synchronous>, transform_indices = @transform_2, window_bounds = array<i64: 1, 64>}, {transform_indices = @transform_3, window_bounds = array<i64: 16, 64>}]} {
    %c0 = arith.constant 0 : index
    %c0_0 = arith.constant 0 : index
    %0 = vector.load %arg1[%c0, %c0_0] : memref<16x32xbf16, #tpu.memory_space<vmem>>, vector<16x32xbf16>
    %c0_1 = arith.constant 0 : index
    %c0_2 = arith.constant 0 : index
    %1 = vector.load %arg2[%c0_1, %c0_2] : memref<32x64xbf16, #tpu.memory_space<vmem>>, vector<32x64xbf16>
    %cst = arith.constant dense<0.000000e+00> : vector<16x64xf32>
    %2 = tpu.matmul %0, %1, %cst {dimension_numbers = #tpu.dot_dimension_numbers<[1], [0], [0], [1], [0, 0, 1, 1], [], []>} : vector<16x32xbf16>, vector<32x64xbf16>, vector<16x64xf32> -> vector<16x64xf32>
    %c0_3 = arith.constant 0 : index
    %c0_4 = arith.constant 0 : index
    %3 = vector.load %arg3[%c0_3, %c0_4] : memref<1x64xf32, #tpu.memory_space<vmem>>, vector<1x64xf32>
    %4 = vector.broadcast %3 : vector<1x64xf32> to vector<16x64xf32>
    %5 = arith.addf %2, %4 : vector<16x64xf32>
    %cst_5 = arith.constant 5.000000e-01 : f32
    %6 = vector.broadcast %cst_5 : f32 to vector<16x64xf32>
    %7 = arith.mulf %6, %5 : vector<16x64xf32>
    %cst_6 = arith.constant 4.471500e-02 : f32
    %8 = vector.broadcast %cst_6 : f32 to vector<16x64xf32>
    %9 = arith.mulf %8, %5 : vector<16x64xf32>
    %10 = arith.mulf %9, %5 : vector<16x64xf32>
    %11 = arith.mulf %10, %5 : vector<16x64xf32>
    %12 = arith.addf %5, %11 : vector<16x64xf32>
    %cst_7 = arith.constant 0.797884583 : f32
    %13 = vector.broadcast %cst_7 : f32 to vector<16x64xf32>
    %14 = arith.mulf %13, %12 : vector<16x64xf32>
    %15 = math.tanh %14 : vector<16x64xf32>
    %cst_8 = arith.constant 1.000000e+00 : f32
    %16 = vector.broadcast %cst_8 : f32 to vector<16x64xf32>
    %17 = arith.addf %16, %15 : vector<16x64xf32>
    %18 = arith.mulf %7, %17 : vector<16x64xf32>
    %19 = arith.truncf %18 : vector<16x64xf32> to vector<16x64xbf16>
    %c0_9 = arith.constant 0 : index
    %c0_10 = arith.constant 0 : index
    %20 = vector.load %arg4[%c0_9, %c0_10] : memref<16x64xbf16, #tpu.memory_space<vmem>>, vector<16x64xbf16>
    tpu.vector_store %arg4[%c0_9, %c0_10], %19 {strides = array<i32>} : memref<16x64xbf16, #tpu.memory_space<vmem>>, vector<16x64xbf16>,
    return
  }
  func.func @transform_0(%arg0: i32) -> (i32, i32) {
    %c0_i32 = arith.constant 0 : i32
    %c0_i32_0 = arith.constant 0 : i32
    return %arg0, %c0_i32 : i32, i32
  }
  func.func @transform_1(%arg0: i32) -> (i32, i32) {
    %c0_i32 = arith.constant 0 : i32
    %c0_i32_0 = arith.constant 0 : i32
    %c0_i32_1 = arith.constant 0 : i32
    return %c0_i32, %c0_i32_0 : i32, i32
  }
  func.func @transform_2(%arg0: i32) -> (i32, i32) {
    %c0_i32 = arith.constant 0 : i32
    %c0_i32_0 = arith.constant 0 : i32
    %c0_i32_1 = arith.constant 0 : i32
    return %c0_i32, %c0_i32_0 : i32, i32
  }
  func.func @transform_3(%arg0: i32) -> (i32, i32) {
    %c0_i32 = arith.constant 0 : i32
    %c0_i32_0 = arith.constant 0 : i32
    return %arg0, %c0_i32 : i32, i32
  }
}

module attributes {stable_mosaic.version = 11 : i64} {
  func.func @_matmul_bias_res_ln_kernel(%arg0: i32, %arg1: memref<16x32xbf16, #tpu.memory_space<vmem>>, %arg2: memref<32x32xbf16, #tpu.memory_space<vmem>>, %arg3: memref<1x32xf32, #tpu.memory_space<vmem>>, %arg4: memref<16x32xbf16, #tpu.memory_space<vmem>>, %arg5: memref<1x32xf32, #tpu.memory_space<vmem>>, %arg6: memref<1x32xf32, #tpu.memory_space<vmem>>, %arg7: memref<16x32xbf16, #tpu.memory_space<vmem>>) attributes {dimension_semantics = [#tpu.dimension_semantics<parallel>], iteration_bounds = array<i64: 1>, scalar_prefetch = 0 : i64, scratch_operands = 0 : i64, tpu.core_type = #tpu.core_type<tc>, window_params = [{transform_indices = @transform_0, window_bounds = array<i64: 16, 32>}, {pipeline_mode = #tpu.pipeline_mode<synchronous>, transform_indices = @transform_1, window_bounds = array<i64: 32, 32>}, {pipeline_mode = #tpu.pipeline_mode<synchronous>, transform_indices = @transform_2, window_bounds = array<i64: 1, 32>}, {transform_indices = @transform_3, window_bounds = array<i64: 16, 32>}, {pipeline_mode = #tpu.pipeline_mode<synchronous>, transform_indices = @transform_4, window_bounds = array<i64: 1, 32>}, {pipeline_mode = #tpu.pipeline_mode<synchronous>, transform_indices = @transform_5, window_bounds = array<i64: 1, 32>}, {transform_indices = @transform_6, window_bounds = array<i64: 16, 32>}]} {
    %c0 = arith.constant 0 : index
    %c0_0 = arith.constant 0 : index
    %0 = vector.load %arg1[%c0, %c0_0] : memref<16x32xbf16, #tpu.memory_space<vmem>>, vector<16x32xbf16>
    %c0_1 = arith.constant 0 : index
    %c0_2 = arith.constant 0 : index
    %1 = vector.load %arg2[%c0_1, %c0_2] : memref<32x32xbf16, #tpu.memory_space<vmem>>, vector<32x32xbf16>
    %cst = arith.constant dense<0.000000e+00> : vector<16x32xf32>
    %2 = tpu.matmul %0, %1, %cst {dimension_numbers = #tpu.dot_dimension_numbers<[1], [0], [0], [1], [0, 0, 1, 1], [], []>} : vector<16x32xbf16>, vector<32x32xbf16>, vector<16x32xf32> -> vector<16x32xf32>
    %c0_3 = arith.constant 0 : index
    %c0_4 = arith.constant 0 : index
    %3 = vector.load %arg3[%c0_3, %c0_4] : memref<1x32xf32, #tpu.memory_space<vmem>>, vector<1x32xf32>
    %4 = vector.broadcast %3 : vector<1x32xf32> to vector<16x32xf32>
    %5 = arith.addf %2, %4 : vector<16x32xf32>
    %c0_5 = arith.constant 0 : index
    %c0_6 = arith.constant 0 : index
    %6 = vector.load %arg4[%c0_5, %c0_6] : memref<16x32xbf16, #tpu.memory_space<vmem>>, vector<16x32xbf16>
    %7 = arith.extf %6 : vector<16x32xbf16> to vector<16x32xf32>
    %8 = arith.addf %5, %7 : vector<16x32xf32>
    %cst_7 = arith.constant dense<0.000000e+00> : vector<16xf32>
    %9 = vector.multi_reduction <add>, %8, %cst_7 [1] : vector<16x32xf32> to vector<16xf32>
    %10 = vector.shape_cast %9 : vector<16xf32> to vector<16x1xf32>
    %cst_8 = arith.constant 3.200000e+01 : f32
    %11 = vector.broadcast %cst_8 : f32 to vector<16x1xf32>
    %12 = arith.divf %10, %11 : vector<16x1xf32>
    %13 = vector.broadcast %12 : vector<16x1xf32> to vector<16x32xf32>
    %14 = arith.subf %8, %13 : vector<16x32xf32>
    %15 = arith.mulf %14, %14 : vector<16x32xf32>
    %cst_9 = arith.constant dense<0.000000e+00> : vector<16xf32>
    %16 = vector.multi_reduction <add>, %15, %cst_9 [1] : vector<16x32xf32> to vector<16xf32>
    %17 = vector.shape_cast %16 : vector<16xf32> to vector<16x1xf32>
    %cst_10 = arith.constant 3.200000e+01 : f32
    %18 = vector.broadcast %cst_10 : f32 to vector<16x1xf32>
    %19 = arith.divf %17, %18 : vector<16x1xf32>
    %cst_11 = arith.constant 9.99999996E-13 : f32
    %20 = vector.broadcast %cst_11 : f32 to vector<16x1xf32>
    %21 = arith.addf %19, %20 : vector<16x1xf32>
    %22 = math.rsqrt %21 : vector<16x1xf32>
    %23 = vector.broadcast %12 : vector<16x1xf32> to vector<16x32xf32>
    %24 = arith.subf %8, %23 : vector<16x32xf32>
    %25 = vector.broadcast %22 : vector<16x1xf32> to vector<16x32xf32>
    %26 = arith.mulf %24, %25 : vector<16x32xf32>
    %c0_12 = arith.constant 0 : index
    %c0_13 = arith.constant 0 : index
    %27 = vector.load %arg5[%c0_12, %c0_13] : memref<1x32xf32, #tpu.memory_space<vmem>>, vector<1x32xf32>
    %28 = vector.broadcast %27 : vector<1x32xf32> to vector<16x32xf32>
    %29 = arith.mulf %26, %28 : vector<16x32xf32>
    %c0_14 = arith.constant 0 : index
    %c0_15 = arith.constant 0 : index
    %30 = vector.load %arg6[%c0_14, %c0_15] : memref<1x32xf32, #tpu.memory_space<vmem>>, vector<1x32xf32>
    %31 = vector.broadcast %30 : vector<1x32xf32> to vector<16x32xf32>
    %32 = arith.addf %29, %31 : vector<16x32xf32>
    %33 = arith.truncf %32 : vector<16x32xf32> to vector<16x32xbf16>
    %c0_16 = arith.constant 0 : index
    %c0_17 = arith.constant 0 : index
    %34 = vector.load %arg7[%c0_16, %c0_17] : memref<16x32xbf16, #tpu.memory_space<vmem>>, vector<16x32xbf16>
    tpu.vector_store %arg7[%c0_16, %c0_17], %33 {strides = array<i32>} : memref<16x32xbf16, #tpu.memory_space<vmem>>, vector<16x32xbf16>,
    return
  }
  func.func @transform_0(%arg0: i32) -> (i32, i32) {
    %c0_i32 = arith.constant 0 : i32
    %c0_i32_0 = arith.constant 0 : i32
    return %arg0, %c0_i32 : i32, i32
  }
  func.func @transform_1(%arg0: i32) -> (i32, i32) {
    %c0_i32 = arith.constant 0 : i32
    %c0_i32_0 = arith.constant 0 : i32
    %c0_i32_1 = arith.constant 0 : i32
    return %c0_i32, %c0_i32_0 : i32, i32
  }
  func.func @transform_2(%arg0: i32) -> (i32, i32) {
    %c0_i32 = arith.constant 0 : i32
    %c0_i32_0 = arith.constant 0 : i32
    %c0_i32_1 = arith.constant 0 : i32
    return %c0_i32, %c0_i32_0 : i32, i32
  }
  func.func @transform_3(%arg0: i32) -> (i32, i32) {
    %c0_i32 = arith.constant 0 : i32
    %c0_i32_0 = arith.constant 0 : i32
    return %arg0, %c0_i32 : i32, i32
  }
  func.func @transform_4(%arg0: i32) -> (i32, i32) {
    %c0_i32 = arith.constant 0 : i32
    %c0_i32_0 = arith.constant 0 : i32
    %c0_i32_1 = arith.constant 0 : i32
    return %c0_i32, %c0_i32_0 : i32, i32
  }
  func.func @transform_5(%arg0: i32) -> (i32, i32) {
    %c0_i32 = arith.constant 0 : i32
    %c0_i32_0 = arith.constant 0 : i32
    %c0_i32_1 = arith.constant 0 : i32
    return %c0_i32, %c0_i32_0 : i32, i32
  }
  func.func @transform_6(%arg0: i32) -> (i32, i32) {
    %c0_i32 = arith.constant 0 : i32
    %c0_i32_0 = arith.constant 0 : i32
    return %arg0, %c0_i32 : i32, i32
  }
}

module attributes {stable_mosaic.version = 11 : i64} {
  func.func @_matmul_bias_res_ln_kernel(%arg0: i32, %arg1: memref<16x64xbf16, #tpu.memory_space<vmem>>, %arg2: memref<64x32xbf16, #tpu.memory_space<vmem>>, %arg3: memref<1x32xf32, #tpu.memory_space<vmem>>, %arg4: memref<16x32xbf16, #tpu.memory_space<vmem>>, %arg5: memref<1x32xf32, #tpu.memory_space<vmem>>, %arg6: memref<1x32xf32, #tpu.memory_space<vmem>>, %arg7: memref<16x32xbf16, #tpu.memory_space<vmem>>) attributes {dimension_semantics = [#tpu.dimension_semantics<parallel>], iteration_bounds = array<i64: 1>, scalar_prefetch = 0 : i64, scratch_operands = 0 : i64, tpu.core_type = #tpu.core_type<tc>, window_params = [{transform_indices = @transform_0, window_bounds = array<i64: 16, 64>}, {pipeline_mode = #tpu.pipeline_mode<synchronous>, transform_indices = @transform_1, window_bounds = array<i64: 64, 32>}, {pipeline_mode = #tpu.pipeline_mode<synchronous>, transform_indices = @transform_2, window_bounds = array<i64: 1, 32>}, {transform_indices = @transform_3, window_bounds = array<i64: 16, 32>}, {pipeline_mode = #tpu.pipeline_mode<synchronous>, transform_indices = @transform_4, window_bounds = array<i64: 1, 32>}, {pipeline_mode = #tpu.pipeline_mode<synchronous>, transform_indices = @transform_5, window_bounds = array<i64: 1, 32>}, {transform_indices = @transform_6, window_bounds = array<i64: 16, 32>}]} {
    %c0 = arith.constant 0 : index
    %c0_0 = arith.constant 0 : index
    %0 = vector.load %arg1[%c0, %c0_0] : memref<16x64xbf16, #tpu.memory_space<vmem>>, vector<16x64xbf16>
    %c0_1 = arith.constant 0 : index
    %c0_2 = arith.constant 0 : index
    %1 = vector.load %arg2[%c0_1, %c0_2] : memref<64x32xbf16, #tpu.memory_space<vmem>>, vector<64x32xbf16>
    %cst = arith.constant dense<0.000000e+00> : vector<16x32xf32>
    %2 = tpu.matmul %0, %1, %cst {dimension_numbers = #tpu.dot_dimension_numbers<[1], [0], [0], [1], [0, 0, 1, 1], [], []>} : vector<16x64xbf16>, vector<64x32xbf16>, vector<16x32xf32> -> vector<16x32xf32>
    %c0_3 = arith.constant 0 : index
    %c0_4 = arith.constant 0 : index
    %3 = vector.load %arg3[%c0_3, %c0_4] : memref<1x32xf32, #tpu.memory_space<vmem>>, vector<1x32xf32>
    %4 = vector.broadcast %3 : vector<1x32xf32> to vector<16x32xf32>
    %5 = arith.addf %2, %4 : vector<16x32xf32>
    %c0_5 = arith.constant 0 : index
    %c0_6 = arith.constant 0 : index
    %6 = vector.load %arg4[%c0_5, %c0_6] : memref<16x32xbf16, #tpu.memory_space<vmem>>, vector<16x32xbf16>
    %7 = arith.extf %6 : vector<16x32xbf16> to vector<16x32xf32>
    %8 = arith.addf %5, %7 : vector<16x32xf32>
    %cst_7 = arith.constant dense<0.000000e+00> : vector<16xf32>
    %9 = vector.multi_reduction <add>, %8, %cst_7 [1] : vector<16x32xf32> to vector<16xf32>
    %10 = vector.shape_cast %9 : vector<16xf32> to vector<16x1xf32>
    %cst_8 = arith.constant 3.200000e+01 : f32
    %11 = vector.broadcast %cst_8 : f32 to vector<16x1xf32>
    %12 = arith.divf %10, %11 : vector<16x1xf32>
    %13 = vector.broadcast %12 : vector<16x1xf32> to vector<16x32xf32>
    %14 = arith.subf %8, %13 : vector<16x32xf32>
    %15 = arith.mulf %14, %14 : vector<16x32xf32>
    %cst_9 = arith.constant dense<0.000000e+00> : vector<16xf32>
    %16 = vector.multi_reduction <add>, %15, %cst_9 [1] : vector<16x32xf32> to vector<16xf32>
    %17 = vector.shape_cast %16 : vector<16xf32> to vector<16x1xf32>
    %cst_10 = arith.constant 3.200000e+01 : f32
    %18 = vector.broadcast %cst_10 : f32 to vector<16x1xf32>
    %19 = arith.divf %17, %18 : vector<16x1xf32>
    %cst_11 = arith.constant 9.99999996E-13 : f32
    %20 = vector.broadcast %cst_11 : f32 to vector<16x1xf32>
    %21 = arith.addf %19, %20 : vector<16x1xf32>
    %22 = math.rsqrt %21 : vector<16x1xf32>
    %23 = vector.broadcast %12 : vector<16x1xf32> to vector<16x32xf32>
    %24 = arith.subf %8, %23 : vector<16x32xf32>
    %25 = vector.broadcast %22 : vector<16x1xf32> to vector<16x32xf32>
    %26 = arith.mulf %24, %25 : vector<16x32xf32>
    %c0_12 = arith.constant 0 : index
    %c0_13 = arith.constant 0 : index
    %27 = vector.load %arg5[%c0_12, %c0_13] : memref<1x32xf32, #tpu.memory_space<vmem>>, vector<1x32xf32>
    %28 = vector.broadcast %27 : vector<1x32xf32> to vector<16x32xf32>
    %29 = arith.mulf %26, %28 : vector<16x32xf32>
    %c0_14 = arith.constant 0 : index
    %c0_15 = arith.constant 0 : index
    %30 = vector.load %arg6[%c0_14, %c0_15] : memref<1x32xf32, #tpu.memory_space<vmem>>, vector<1x32xf32>
    %31 = vector.broadcast %30 : vector<1x32xf32> to vector<16x32xf32>
    %32 = arith.addf %29, %31 : vector<16x32xf32>
    %33 = arith.truncf %32 : vector<16x32xf32> to vector<16x32xbf16>
    %c0_16 = arith.constant 0 : index
    %c0_17 = arith.constant 0 : index
    %34 = vector.load %arg7[%c0_16, %c0_17] : memref<16x32xbf16, #tpu.memory_space<vmem>>, vector<16x32xbf16>
    tpu.vector_store %arg7[%c0_16, %c0_17], %33 {strides = array<i32>} : memref<16x32xbf16, #tpu.memory_space<vmem>>, vector<16x32xbf16>,
    return
  }
  func.func @transform_0(%arg0: i32) -> (i32, i32) {
    %c0_i32 = arith.constant 0 : i32
    %c0_i32_0 = arith.constant 0 : i32
    return %arg0, %c0_i32 : i32, i32
  }
  func.func @transform_1(%arg0: i32) -> (i32, i32) {
    %c0_i32 = arith.constant 0 : i32
    %c0_i32_0 = arith.constant 0 : i32
    %c0_i32_1 = arith.constant 0 : i32
    return %c0_i32, %c0_i32_0 : i32, i32
  }
  func.func @transform_2(%arg0: i32) -> (i32, i32) {
    %c0_i32 = arith.constant 0 : i32
    %c0_i32_0 = arith.constant 0 : i32
    %c0_i32_1 = arith.constant 0 : i32
    return %c0_i32, %c0_i32_0 : i32, i32
  }
  func.func @transform_3(%arg0: i32) -> (i32, i32) {
    %c0_i32 = arith.constant 0 : i32
    %c0_i32_0 = arith.constant 0 : i32
    return %arg0, %c0_i32 : i32, i32
  }
  func.func @transform_4(%arg0: i32) -> (i32, i32) {
    %c0_i32 = arith.constant 0 : i32
    %c0_i32_0 = arith.constant 0 : i32
    %c0_i32_1 = arith.constant 0 : i32
    return %c0_i32, %c0_i32_0 : i32, i32
  }
  func.func @transform_5(%arg0: i32) -> (i32, i32) {
    %c0_i32 = arith.constant 0 : i32
    %c0_i32_0 = arith.constant 0 : i32
    %c0_i32_1 = arith.constant 0 : i32
    return %c0_i32, %c0_i32_0 : i32, i32
  }
  func.func @transform_6(%arg0: i32) -> (i32, i32) {
    %c0_i32 = arith.constant 0 : i32
    %c0_i32_0 = arith.constant 0 : i32
    return %arg0, %c0_i32 : i32, i32
  }
}

</mosaic_0001>

<llo_original>
// kernel: flash_att_encoder.10
$region0: #{flash_att_encoder.10}
  #allocation0 [shape = 'u32[]', space=smem, size = 0x4, offset = 0x4, fixed_abs, tag = 'smem constant byte address 0x4 - core index']
  #allocation1 [shape = 'u32[144,128]{1,0:T(1,128)}', space=vmem, size = 0x12000, scoped, tag = 'internal scratch']
  %s0 = inlined_call_operand.vmem [shape: bf16[16,32], index: 0, kind: input, shape index: {}]
  %s1 = inlined_call_operand.vmem [shape: bf16[32,96], index: 1, kind: input, shape index: {}]
  %s2 = inlined_call_operand.vmem [shape: f32[1,96], index: 2, kind: input, shape index: {}]
  %s3 = inlined_call_operand.vmem [shape: bf16[16,32], index: 3, kind: output, shape index: {0}]
  %s4 = inlined_call_operand.vmem [shape: bf16[16,32], index: 4, kind: output, shape index: {1}]
  %s5 = inlined_call_operand.vmem [shape: bf16[16,32], index: 5, kind: output, shape index: {2}]
  %6 = xla_tuple %s3, %s4, %s5
  %s7 = sld [smem:[#allocation0]]
  $region38: #{flash_att_encoder.10} parent=0
    _
  %s9 = ssub.s32 1, %s7
  %s10 = scalar_select 0, %s9, %s7
  // Predicated region
  $region2: #{flash_att_encoder.10} parent=0 // pred_check
    _
  $region3: #{flash_att_encoder.10} parent=0 // pred_check_branch
    %12 = sbr.rel (0) target = $region5
  $region4: #{flash_att_encoder.10} parent=0 // pred_region
    _
  $region5: #{flash_att_encoder.10} parent=0 // pred_fallthru
    _
  // Predicated region
  $region6: #{flash_att_encoder.10} parent=0 // pred_check
    _
  $region7: #{flash_att_encoder.10} parent=0 // pred_check_branch
    %14 = sbr.rel (0) target = $region9
  $region8: #{flash_att_encoder.10} parent=0 // pred_region
    _
  $region9: #{flash_att_encoder.10} parent=0 // pred_fallthru
    _
  // Predicated region
  $region10: #{flash_att_encoder.10} parent=0 // pred_check
    _
  $region11: #{flash_att_encoder.10} parent=0 // pred_check_branch
    %16 = sbr.rel (0) target = $region13
  $region12: #{flash_att_encoder.10} parent=0 // pred_region
    _
  $region13: #{flash_att_encoder.10} parent=0 // pred_fallthru
    _
  %v18 = vld [vmem:[%s0] sm:$0xf]
  %v19 = vld [vmem:[%s0 + $0x4] sm:$0xf]
  %v20 = vld [vmem:[%s1] sm:$0xf]
  %v21 = vld [vmem:[%s1 + $0x4] sm:$0xf]
  %v22 = vld [vmem:[%s1 + $0x8] sm:$0xf]
  %v23 = vld [vmem:[%s1 + $0xc] sm:$0xf]
  %v24 = vld [vmem:[%s2] sm:$0x1]
  %v26 = vlaneseq
  %v27 = vshrl.u32 %v26, 7
  %v28 = vsub.s32 0, %v27
  %v29 = vrot.slane %v24, %v28
  %v33 = vunpack.c.l.b16 %v18
  %v34 = vunpack.c.l.b16 %v19
  %v35 = vpack.c.b16 %v34, %v33
  %v40 = vunpack.c.l.b16 %v20
  %v41 = vunpack.c.l.b16 %v21
  %v42 = vunpack.c.l.b16 %v22
  %v43 = vunpack.c.l.b16 %v23
  %v44 = vpack.c.b16 %v41, %v40
  %v45 = vpack.c.b16 %v43, %v42
  %vm48 = vcmask 261120
  %v50 = vsel %vm48, %v35, 0
  %52 = vmatprep.subr.bf16.mxu0 0
  %53 = vmatpush1.bf16.msra.mxu0 0
  %54 = vmatprep.subr.bf16.mxu0 0
  %55 = vmatpush1.bf16.msra.mxu0 0
  %56 = vmatprep.subr.bf16.mxu0 0
  %57 = vmatpush1.bf16.msra.mxu0 0
  %58 = vmatprep.subr.bf16.mxu0 0
  %59 = vmatpush1.bf16.msra.mxu0 0
  %60 = vmatprep.subr.bf16.mxu0 0
  %61 = vmatpush1.bf16.msra.mxu0 0
  %62 = vmatprep.subr.bf16.mxu0 0
  %63 = vmatpush1.bf16.msra.mxu0 0
  %64 = vmatprep.subr.bf16.mxu0 0
  %65 = vmatpush1.bf16.msra.mxu0 %v45
  %66 = vmatprep.subr.bf16.mxu0 0
  %67 = vmatpush1.bf16.msra.mxu0 %v44
  %68 = vmatprep.subr.bf16.mxu0 0
  %69 = vmatpush2.bf16.msra.mxu0 0
  %70 = vmatprep.subr.bf16.mxu0 0
  %71 = vmatpush2.bf16.msra.mxu0 0
  %72 = vmatprep.subr.bf16.mxu0 0
  %73 = vmatpush2.bf16.msra.mxu0 0
  %74 = vmatprep.subr.bf16.mxu0 0
  %75 = vmatpush2.bf16.msra.mxu0 0
  %76 = vmatprep.subr.bf16.mxu0 0
  %77 = vmatpush2.bf16.msra.mxu0 0
  %78 = vmatprep.subr.bf16.mxu0 0
  %79 = vmatpush2.bf16.msra.mxu0 0
  %80 = vmatprep.subr.bf16.mxu0 0
  %81 = vmatpush2.bf16.msra.mxu0 0
  %82 = vmatprep.subr.bf16.mxu0 0
  %83 = vmatpush2.bf16.msra.mxu0 0
  %84 = vmatprep.mubr.bf16.mxu0 0
  %85 = vmatmul.mubr.bf16.gmra.mxu0 %v50
  %v86 = vpop.f32.mrf.mxu0
  %v87 = vadd.f32 %v29, %v86
  %v88 = vpop.f32.mrf.mxu0
  %v89 = vpop.f32.mrf.mxu0
  %v90 = vadd.f32 %v29, %v89
  %v91 = vpop.f32.mrf.mxu0
  %92 = vdwg.mxu0
  %v93 = vpack.c.bf16 %v90, %v87
  %v95 = vunpack.c.l.b16 %v93
  %v96 = vunpack.c.h.b16 %v93
  %v97 = vpack.c.b16 %v95, %v95
  %v98 = vpack.c.b16 %v96, %v96
  %vm101 = vcmask 257024
  %102 = vst.msk [vmem:[%s3] sm:$0xf] %vm101, %v97
  %103 = vst.msk [vmem:[%s3 + $0x4] sm:$0xf] %vm101, %v98
  %104 = vrot.lane.b32.xlu0 %v97, 96
  %v105 = vpop.permute.xlu0 %104
  %106 = vrot.lane.b32.xlu0 %v98, 96
  %v107 = vpop.permute.xlu0 %106
  %110 = vst.msk [vmem:[%s4] sm:$0xf] %vm101, %v105
  %111 = vst.msk [vmem:[%s4 + $0x4] sm:$0xf] %vm101, %v107
  %112 = vrot.lane.b32.xlu0 %v97, 64
  %v113 = vpop.permute.xlu0 %112
  %114 = vrot.lane.b32.xlu0 %v98, 64
  %v115 = vpop.permute.xlu0 %114
  %118 = vst.msk [vmem:[%s5] sm:$0xf] %vm101, %v113
  %119 = vst.msk [vmem:[%s5 + $0x4] sm:$0xf] %vm101, %v115
  // Predicated region
  $region14: #{flash_att_encoder.10} parent=0 // pred_check
    _
  $region15: #{flash_att_encoder.10} parent=0 // pred_check_branch
    %121 = sbr.rel (0) target = $region17
  $region16: #{flash_att_encoder.10} parent=0 // pred_region
    _
  $region17: #{flash_att_encoder.10} parent=0 // pred_fallthru
    _
  // Predicated region
  $region18: #{flash_att_encoder.10} parent=0 // pred_check
    _
  $region19: #{flash_att_encoder.10} parent=0 // pred_check_branch
    %123 = sbr.rel (0) target = $region21
  $region20: #{flash_att_encoder.10} parent=0 // pred_region
    _
  $region21: #{flash_att_encoder.10} parent=0 // pred_fallthru
    _
  // Predicated region
  $region22: #{flash_att_encoder.10} parent=0 // pred_check
    _
  $region23: #{flash_att_encoder.10} parent=0 // pred_check_branch
    %125 = sbr.rel (0) target = $region25
  $region24: #{flash_att_encoder.10} parent=0 // pred_region
    _
  $region25: #{flash_att_encoder.10} parent=0 // pred_fallthru
    _
  // Predicated region
  $region26: #{flash_att_encoder.10} parent=0 // pred_check
    _
  $region27: #{flash_att_encoder.10} parent=0 // pred_check_branch
    %127 = sbr.rel (0) target = $region29
  $region28: #{flash_att_encoder.10} parent=0 // pred_region
    _
  $region29: #{flash_att_encoder.10} parent=0 // pred_fallthru
    _
  // Predicated region
  $region30: #{flash_att_encoder.10} parent=0 // pred_check
    _
  $region31: #{flash_att_encoder.10} parent=0 // pred_check_branch
    %129 = sbr.rel (0) target = $region33
  $region32: #{flash_att_encoder.10} parent=0 // pred_region
    _
  $region33: #{flash_att_encoder.10} parent=0 // pred_fallthru
    _
  // Predicated region
  $region34: #{flash_att_encoder.10} parent=0 // pred_check
    _
  $region35: #{flash_att_encoder.10} parent=0 // pred_check_branch
    %131 = sbr.rel (0) target = $region37
  $region36: #{flash_att_encoder.10} parent=0 // pred_region
    _
  $region37: #{flash_att_encoder.10} parent=0 // pred_fallthru
    _

// kernel: flash_att_encoder.11
$region0: #{flash_att_encoder.11}
  #allocation0 [shape = 'u32[]', space=smem, size = 0x4, offset = 0x4, fixed_abs, tag = 'smem constant byte address 0x4 - core index']
  #allocation1 [shape = 'u32[144,128]{1,0:T(1,128)}', space=vmem, size = 0x12000, scoped, tag = 'internal scratch']
  %s0 = inlined_call_operand.vmem [shape: bf16[2,8,32], index: 0, kind: input, shape index: {}]
  %s1 = inlined_call_operand.vmem [shape: bf16[2,8,32], index: 1, kind: input, shape index: {}]
  %s2 = inlined_call_operand.vmem [shape: bf16[2,8,32], index: 2, kind: input, shape index: {}]
  %s3 = inlined_call_operand.vmem [shape: f32[2,1,8], index: 3, kind: input, shape index: {}]
  %s4 = inlined_call_operand.vmem [shape: bf16[2,8,32], index: 4, kind: output, shape index: {}]
  %s5 = sld [smem:[#allocation0]]
  $region49: #{flash_att_encoder.11} parent=0
    _
  %s7 = ssub.s32 1, %s5
  %s8 = scalar_select 0, %s7, %s5
  loop: start=0, step=1, limit=4
  $region2: #{flash_att_encoder.11} parent=0 // loop_pre_header
    _
  $region3: #{flash_att_encoder.11} parent=0 // loop_header
    %s10 = sphi 0, %s14
    %p11 = scmp.ge.s32.totalorder %s10, 4
    %s17 = sphi 0, %s29
    %s18 = sphi 0, %s25
    %s19 = sphi 0, %s17
    %s20 = sphi 0, %s18
    %s21 = sphi 0, %s19
    %s22 = sphi 0, %s20
    %s34 = sphi 0, %s36
    %s37 = sphi 0, %s34
    %s38 = sphi 0, %s37
    %s54 = sphi 0, %s38
    %s60 = sphi 0, %s62
    %s63 = sphi 0, %s60
    %s64 = sphi 0, %s63
    %s80 = sphi 0, %s64
    %s86 = sphi 0, %s88
    %s89 = sphi 0, %s86
    %s90 = sphi 0, %s89
    %s106 = sphi 0, %s90
    %s112 = sphi 0, %s114
    %s115 = sphi 0, %s112
    %s116 = sphi 0, %s115
    %s132 = sphi 0, %s116
    %s140 = sphi 0, %s142
    %s143 = sphi 0, %s140
    %s144 = sphi 0, %s143
    %s160 = sphi 0, %s144
  $region4: #{flash_att_encoder.11} parent=0 // loop_header_branch
    %13 = sbr.rel (%p11) target = $region8
  $region5: #{flash_att_encoder.11} parent=0 // loop_body
    %s15 = ssub.s32 %s10, 1
    %s16 = ssub.s32 %s10, 2
    %s23 = sadd.s32 1, %s18
    %p24 = scmp.ge.s32.totalorder %s23, 1
    %s25 = scalar_select %p24, 0, %s23
    %s26 = sadd.s32 1, %s17
    %s27 = scalar_select %p24, %s26, %s17
    %p28 = scmp.ge.s32.totalorder %s27, 2
    %s29 = scalar_select %p28, 0, %s27
    %s30 = ssub.s32 %s17, %s29
    %s31 = ssub.s32 %s18, %s25
    %s32 = sor.u32 %s30, %s31
    %p33 = scmp.eq.s32.totalorder %s32, 0
    %s35 = sadd.s32 %s34, 1
    %s36 = scalar_select %p33, %s34, %s35
    %p39 = pneg %p33
    %p40 = scmp.eq.s32.totalorder %s10, 1
    %p41 = por %p39, %p40
    %p42 = scmp.ne.s32.totalorder %s34, %s37
    %p43 = scmp.eq.s32.totalorder %s10, 0
    %p44 = por %p42, %p43
    %p45 = scmp.ne.s32.totalorder %s34, %s37
    %p46 = scmp.eq.s32.totalorder %s15, 1
    %p47 = por %p45, %p46
    %p48 = scmp.ne.s32.totalorder %s37, %s38
    %p49 = scmp.eq.s32.totalorder %s15, 0
    %p50 = por %p48, %p49
    %p51 = scmp.ne.s32.totalorder %s37, %s38
    %p52 = scmp.eq.s32.totalorder %s16, 1
    %p53 = por %p51, %p52
    %p55 = scmp.ne.s32.totalorder %s38, %s54
    %p56 = scmp.eq.s32.totalorder %s16, 0
    %p57 = por %p55, %p56
    %s58 = ssub.s32 %s17, %s29
    %p59 = scmp.eq.s32.totalorder %s58, 0
    %s61 = sadd.s32 %s60, 1
    %s62 = scalar_select %p59, %s60, %s61
    %p65 = pneg %p59
    %p66 = scmp.eq.s32.totalorder %s10, 1
    %p67 = por %p65, %p66
    %p68 = scmp.ne.s32.totalorder %s60, %s63
    %p69 = scmp.eq.s32.totalorder %s10, 0
    %p70 = por %p68, %p69
    %p71 = scmp.ne.s32.totalorder %s60, %s63
    %p72 = scmp.eq.s32.totalorder %s15, 1
    %p73 = por %p71, %p72
    %p74 = scmp.ne.s32.totalorder %s63, %s64
    %p75 = scmp.eq.s32.totalorder %s15, 0
    %p76 = por %p74, %p75
    %p77 = scmp.ne.s32.totalorder %s63, %s64
    %p78 = scmp.eq.s32.totalorder %s16, 1
    %p79 = por %p77, %p78
    %p81 = scmp.ne.s32.totalorder %s64, %s80
    %p82 = scmp.eq.s32.totalorder %s16, 0
    %p83 = por %p81, %p82
    %s84 = ssub.s32 %s17, %s29
    %p85 = scmp.eq.s32.totalorder %s84, 0
    %s87 = sadd.s32 %s86, 1
    %s88 = scalar_select %p85, %s86, %s87
    %p91 = pneg %p85
    %p92 = scmp.eq.s32.totalorder %s10, 1
    %p93 = por %p91, %p92
    %p94 = scmp.ne.s32.totalorder %s86, %s89
    %p95 = scmp.eq.s32.totalorder %s10, 0
    %p96 = por %p94, %p95
    %p97 = scmp.ne.s32.totalorder %s86, %s89
    %p98 = scmp.eq.s32.totalorder %s15, 1
    %p99 = por %p97, %p98
    %p100 = scmp.ne.s32.totalorder %s89, %s90
    %p101 = scmp.eq.s32.totalorder %s15, 0
    %p102 = por %p100, %p101
    %p103 = scmp.ne.s32.totalorder %s89, %s90
    %p104 = scmp.eq.s32.totalorder %s16, 1
    %p105 = por %p103, %p104
    %p107 = scmp.ne.s32.totalorder %s90, %s106
    %p108 = scmp.eq.s32.totalorder %s16, 0
    %p109 = por %p107, %p108
    %s110 = ssub.s32 %s17, %s29
    %p111 = scmp.eq.s32.totalorder %s110, 0
    %s113 = sadd.s32 %s112, 1
    %s114 = scalar_select %p111, %s112, %s113
    %p117 = pneg %p111
    %p118 = scmp.eq.s32.totalorder %s10, 1
    %p119 = por %p117, %p118
    %p120 = scmp.ne.s32.totalorder %s112, %s115
    %p121 = scmp.eq.s32.totalorder %s10, 0
    %p122 = por %p120, %p121
    %p123 = scmp.ne.s32.totalorder %s112, %s115
    %p124 = scmp.eq.s32.totalorder %s15, 1
    %p125 = por %p123, %p124
    %p126 = scmp.ne.s32.totalorder %s115, %s116
    %p127 = scmp.eq.s32.totalorder %s15, 0
    %p128 = por %p126, %p127
    %p129 = scmp.ne.s32.totalorder %s115, %s116
    %p130 = scmp.eq.s32.totalorder %s16, 1
    %p131 = por %p129, %p130
    %p133 = scmp.ne.s32.totalorder %s116, %s132
    %p134 = scmp.eq.s32.totalorder %s16, 0
    %p135 = por %p133, %p134
    %s136 = ssub.s32 %s17, %s29
    %s137 = ssub.s32 %s18, %s25
    %s138 = sor.u32 %s136, %s137
    %p139 = scmp.eq.s32.totalorder %s138, 0
    %s141 = sadd.s32 %s140, 1
    %s142 = scalar_select %p139, %s140, %s141
    %p145 = pneg %p139
    %p146 = scmp.eq.s32.totalorder %s10, 1
    %p147 = por %p145, %p146
    %p148 = scmp.ne.s32.totalorder %s140, %s143
    %p149 = scmp.eq.s32.totalorder %s10, 0
    %p150 = por %p148, %p149
    %p151 = scmp.ne.s32.totalorder %s140, %s143
    %p152 = scmp.eq.s32.totalorder %s15, 1
    %p153 = por %p151, %p152
    %p154 = scmp.ne.s32.totalorder %s143, %s144
    %p155 = scmp.eq.s32.totalorder %s15, 0
    %p156 = por %p154, %p155
    %p157 = scmp.ne.s32.totalorder %s143, %s144
    %p158 = scmp.eq.s32.totalorder %s16, 1
    %p159 = por %p157, %p158
    %p161 = scmp.ne.s32.totalorder %s144, %s160
    %p162 = scmp.eq.s32.totalorder %s16, 0
    %p163 = por %p161, %p162
    %p164 = scmp.le.s32.totalorder 1, %s10
    %p165 = scmp.lt.s32.totalorder %s10, 3
    %p166 = pnand %p164, %p165
    %p167 = pneg %p166
    // Predicated region
    $region9: #{flash_att_encoder.11} parent=5 // pred_check
      _
    $region10: #{flash_att_encoder.11} parent=5 // pred_check_branch
      %169 = sbr.rel (%p166) target = $region12
    $region11: #{flash_att_encoder.11} parent=5 // pred_region
      %s170 = ssub.s32 %s10, 1
    $region12: #{flash_att_encoder.11} parent=5 // pred_fallthru
      _
    %p171 = scmp.lt.s32.totalorder %s10, 2
    // Predicated region
    $region13: #{flash_att_encoder.11} parent=5 // pred_check
      %p172 = pneg %p171
    $region14: #{flash_att_encoder.11} parent=5 // pred_check_branch
      %174 = sbr.rel (%p172) target = $region16
    $region15: #{flash_att_encoder.11} parent=5 // pred_region
      // Predicated region
      $region17: #{flash_att_encoder.11} parent=15 // pred_check
        %p175 = pneg %p44
      $region18: #{flash_att_encoder.11} parent=15 // pred_check_branch
        %177 = sbr.rel (%p175) target = $region20
      $region19: #{flash_att_encoder.11} parent=15 // pred_region
        %p178 = scmp.lt.s32.totalorder %s17, 1
        %s179 = scalar_select %p178, %s17, 1
        %p180 = scmp.lt.s32.totalorder %s18, 0
        %s181 = scalar_select %p180, %s18, 0
        %s182 = sadd.s32 %s181, %s179
        %s183 = smul.addr %s182, 4
        %s184 = scalar_lea.vmem %s0, %s183
      $region20: #{flash_att_encoder.11} parent=15 // pred_fallthru
        _
      // Predicated region
      $region21: #{flash_att_encoder.11} parent=15 // pred_check
        %p185 = pneg %p70
      $region22: #{flash_att_encoder.11} parent=15 // pred_check_branch
        %187 = sbr.rel (%p185) target = $region24
      $region23: #{flash_att_encoder.11} parent=15 // pred_region
        %p188 = scmp.lt.s32.totalorder %s17, 1
        %s189 = scalar_select %p188, %s17, 1
        %s190 = smul.addr %s189, 4
        %s191 = scalar_lea.vmem %s1, %s190
      $region24: #{flash_att_encoder.11} parent=15 // pred_fallthru
        _
      // Predicated region
      $region25: #{flash_att_encoder.11} parent=15 // pred_check
        %p192 = pneg %p96
      $region26: #{flash_att_encoder.11} parent=15 // pred_check_branch
        %194 = sbr.rel (%p192) target = $region28
      $region27: #{flash_att_encoder.11} parent=15 // pred_region
        %p195 = scmp.lt.s32.totalorder %s17, 1
        %s196 = scalar_select %p195, %s17, 1
        %s197 = smul.addr %s196, 4
        %s198 = scalar_lea.vmem %s2, %s197
      $region28: #{flash_att_encoder.11} parent=15 // pred_fallthru
        _
      // Predicated region
      $region29: #{flash_att_encoder.11} parent=15 // pred_check
        %p199 = pneg %p122
      $region30: #{flash_att_encoder.11} parent=15 // pred_check_branch
        %201 = sbr.rel (%p199) target = $region32
      $region31: #{flash_att_encoder.11} parent=15 // pred_region
        %p202 = scmp.lt.s32.totalorder %s17, 1
        %s203 = scalar_select %p202, %s17, 1
        %s204 = scalar_lea.vmem %s3, %s203
      $region32: #{flash_att_encoder.11} parent=15 // pred_fallthru
        _
    $region16: #{flash_att_encoder.11} parent=5 // pred_fallthru
      _
    %p205 = scmp.le.s32.totalorder 1, %s10
    %p206 = scmp.lt.s32.totalorder %s10, 3
    %p207 = pnand %p205, %p206
    %p208 = pneg %p207
    // Predicated region
    $region33: #{flash_att_encoder.11} parent=5 // pred_check
      _
    $region34: #{flash_att_encoder.11} parent=5 // pred_check_branch
      %210 = sbr.rel (%p207) target = $region36
    $region35: #{flash_att_encoder.11} parent=5 // pred_region
      %s211 = ssub.s32 %s10, 1
      %p212 = scmp.lt.s32.totalorder %s19, 1
      %s213 = scalar_select %p212, %s19, 1
      %p214 = scmp.lt.s32.totalorder %s20, 0
      %s215 = scalar_select %p214, %s20, 0
      %s216 = sadd.s32 %s215, %s213
      %s217 = smul.addr %s216, 4
      %s218 = scalar_lea.vmem %s0, %s217
      %p219 = pneg %p50
      %p220 = pneg %p47
      %p221 = scmp.lt.s32.totalorder %s19, 1
      %s222 = scalar_select %p221, %s19, 1
      %s223 = smul.addr %s222, 4
      %s224 = scalar_lea.vmem %s1, %s223
      %p225 = pneg %p76
      %p226 = pneg %p73
      %p227 = scmp.lt.s32.totalorder %s19, 1
      %s228 = scalar_select %p227, %s19, 1
      %s229 = smul.addr %s228, 4
      %s230 = scalar_lea.vmem %s2, %s229
      %p231 = pneg %p102
      %p232 = pneg %p99
      %p233 = scmp.lt.s32.totalorder %s19, 1
      %s234 = scalar_select %p233, %s19, 1
      %s235 = scalar_lea.vmem %s3, %s234
      %p236 = pneg %p128
      %p237 = pneg %p125
      %p238 = pneg %p156
      %p239 = pneg %p153
      %p240 = scmp.lt.s32.totalorder %s19, 1
      %s241 = scalar_select %p240, %s19, 1
      %p242 = scmp.lt.s32.totalorder %s20, 0
      %s243 = scalar_select %p242, %s20, 0
      %s244 = sadd.s32 %s243, %s241
      %s245 = smul.addr %s244, 4
      %s246 = scalar_lea.vmem %s4, %s245
      %p247 = scmp.lt.s32.totalorder %s19, 1
      %s248 = scalar_select %p247, %s19, 1
      %p249 = scmp.lt.s32.totalorder %s20, 0
      %s250 = scalar_select %p249, %s20, 0
      %s251 = sadd.s32 %s250, %s248
      %s252 = smul.addr %s251, 4
      %s253 = scalar_lea.vmem %s0, %s252
      %p254 = scmp.lt.s32.totalorder %s19, 1
      %s255 = scalar_select %p254, %s19, 1
      %s256 = smul.addr %s255, 4
      %s257 = scalar_lea.vmem %s1, %s256
      %p258 = scmp.lt.s32.totalorder %s19, 1
      %s259 = scalar_select %p258, %s19, 1
      %s260 = smul.addr %s259, 4
      %s261 = scalar_lea.vmem %s2, %s260
      %p262 = scmp.lt.s32.totalorder %s19, 1
      %s263 = scalar_select %p262, %s19, 1
      %s264 = scalar_lea.vmem %s3, %s263
      %p265 = scmp.lt.s32.totalorder %s19, 1
      %s266 = scalar_select %p265, %s19, 1
      %p267 = scmp.lt.s32.totalorder %s20, 0
      %s268 = scalar_select %p267, %s20, 0
      %s269 = sadd.s32 %s268, %s266
      %s270 = smul.addr %s269, 4
      %s271 = scalar_lea.vmem %s4, %s270
      %v273 = vld [vmem:[%s253] sm:$0xf]
      %v274 = vld [vmem:[%s257] sm:$0xf]
      %v275 = vld [vmem:[%s261] sm:$0xf]
      %v276 = vld [vmem:[%s264] sm:$0x1]
      %v278 = vlaneseq
      %v279 = vshrl.u32 %v278, 7
      %v280 = vsub.s32 0, %v279
      %v281 = vrot.slane %v276, %v280
      %vm283 = vcmask 64512
      %v285 = vsel %vm283, %v273, 0
      %v288 = vsel %vm283, %v274, 0
      %290 = vmatprep.subr.bf16.mxu0 0
      %291 = vmatpush1.bf16.xpose.msra.mxu0 0
      %292 = vmatprep.subr.bf16.mxu0 0
      %293 = vmatpush1.bf16.xpose.msra.mxu0 0
      %294 = vmatprep.subr.bf16.mxu0 0
      %295 = vmatpush1.bf16.xpose.msra.mxu0 0
      %296 = vmatprep.subr.bf16.mxu0 0
      %297 = vmatpush1.bf16.xpose.msra.mxu0 0
      %298 = vmatprep.subr.bf16.mxu0 0
      %299 = vmatpush1.bf16.xpose.msra.mxu0 0
      %300 = vmatprep.subr.bf16.mxu0 0
      %301 = vmatpush1.bf16.xpose.msra.mxu0 0
      %302 = vmatprep.subr.bf16.mxu0 0
      %303 = vmatpush1.bf16.xpose.msra.mxu0 0
      %304 = vmatprep.subr.bf16.mxu0 0
      %305 = vmatpush1.bf16.xpose.msra.mxu0 %v288
      %306 = vmatprep.subr.bf16.mxu0 0
      %307 = vmatpush2.bf16.xpose.msra.mxu0 0
      %308 = vmatprep.subr.bf16.mxu0 0
      %309 = vmatpush2.bf16.xpose.msra.mxu0 0
      %310 = vmatprep.subr.bf16.mxu0 0
      %311 = vmatpush2.bf16.xpose.msra.mxu0 0
      %312 = vmatprep.subr.bf16.mxu0 0
      %313 = vmatpush2.bf16.xpose.msra.mxu0 0
      %314 = vmatprep.subr.bf16.mxu0 0
      %315 = vmatpush2.bf16.xpose.msra.mxu0 0
      %316 = vmatprep.subr.bf16.mxu0 0
      %317 = vmatpush2.bf16.xpose.msra.mxu0 0
      %318 = vmatprep.subr.bf16.mxu0 0
      %319 = vmatpush2.bf16.xpose.msra.mxu0 0
      %320 = vmatprep.subr.bf16.mxu0 0
      %321 = vmatpush2.bf16.xpose.msra.mxu0 0
      %322 = vmatprep.mubr.bf16.mxu0 0
      %323 = vmatmul.mubr.bf16.gmra.mxu0 %v285
      %v324 = vpop.f32.mrf.mxu0
      %v325 = vadd.f32 %v281, %v324
      %v326 = vpop.f32.mrf.mxu0
      %v327 = vpop.f32.mrf.mxu0
      %v328 = vpop.f32.mrf.mxu0
      %329 = vdwg.mxu0
      %v330 = vsel %vm283, %v325, -inf
      %331 = vmax.xlane.f32.xlu0 %v330
      %v332 = vpop.xlane.xlu0 %331
      %v333 = vsub.f32 %v325, %v332
      %v334 = vmul.f32 %v333, 1.442695
      %v335 = vpow.pop %v334
      %v336 = vsel %vm283, %v335, 0.0
      %337 = vadd.xlane.f32.xlu0 %v336
      %v338 = vpop.xlane.xlu0 %337
      %v339 = vpack.c.bf16 %v335, %v335
      %v341 = vsel %vm283, %v339, 0
      %vm343 = vcmask 1043456
      %v345 = vsel %vm343, %v275, 0
      %347 = vmatprep.subr.bf16.mxu0 0
      %348 = vmatpush1.bf16.msra.mxu0 0
      %349 = vmatprep.subr.bf16.mxu0 0
      %350 = vmatpush1.bf16.msra.mxu0 0
      %351 = vmatprep.subr.bf16.mxu0 0
      %352 = vmatpush1.bf16.msra.mxu0 0
      %353 = vmatprep.subr.bf16.mxu0 0
      %354 = vmatpush1.bf16.msra.mxu0 0
      %355 = vmatprep.subr.bf16.mxu0 0
      %356 = vmatpush1.bf16.msra.mxu0 0
      %357 = vmatprep.subr.bf16.mxu0 0
      %358 = vmatpush1.bf16.msra.mxu0 0
      %359 = vmatprep.subr.bf16.mxu0 0
      %360 = vmatpush1.bf16.msra.mxu0 0
      %361 = vmatprep.subr.bf16.mxu0 0
      %362 = vmatpush1.bf16.msra.mxu0 %v345
      %363 = vmatprep.subr.bf16.mxu0 0
      %364 = vmatpush2.bf16.msra.mxu0 0
      %365 = vmatprep.subr.bf16.mxu0 0
      %366 = vmatpush2.bf16.msra.mxu0 0
      %367 = vmatprep.subr.bf16.mxu0 0
      %368 = vmatpush2.bf16.msra.mxu0 0
      %369 = vmatprep.subr.bf16.mxu0 0
      %370 = vmatpush2.bf16.msra.mxu0 0
      %371 = vmatprep.subr.bf16.mxu0 0
      %372 = vmatpush2.bf16.msra.mxu0 0
      %373 = vmatprep.subr.bf16.mxu0 0
      %374 = vmatpush2.bf16.msra.mxu0 0
      %375 = vmatprep.subr.bf16.mxu0 0
      %376 = vmatpush2.bf16.msra.mxu0 0
      %377 = vmatprep.subr.bf16.mxu0 0
      %378 = vmatpush2.bf16.msra.mxu0 0
      %379 = vmatprep.mubr.bf16.mxu0 0
      %380 = vmatmul.mubr.bf16.gmra.mxu0 %v341
      %v381 = vpop.f32.mrf.mxu0
      %v382 = vadd.f32 0.0, %v381
      %v383 = vpop.f32.mrf.mxu0
      %v384 = vpop.f32.mrf.mxu0
      %v385 = vpop.f32.mrf.mxu0
      %386 = vdwg.mxu0
      %v387 = vrcp.pop %v338
      %v388 = vmul.f32 %v382, %v387
      %v390 = vunpack.c.l.b16 %v273
      %v391 = vpack.c.b16 %v390, %v390
      %392 = vrot.lane.b32.xlu0 %v391, 120
      %v393 = vpop.permute.xlu0 %392
      %v395 = vunpack.c.l.b16 %v274
      %v396 = vpack.c.b16 %v395, %v395
      %397 = vrot.lane.b32.xlu0 %v396, 120
      %v398 = vpop.permute.xlu0 %397
      %v400 = vsel %vm283, %v393, 0
      %v403 = vsel %vm283, %v398, 0
      %405 = vmatprep.subr.bf16.mxu0 0
      %406 = vmatpush1.bf16.xpose.msra.mxu0 0
      %407 = vmatprep.subr.bf16.mxu0 0
      %408 = vmatpush1.bf16.xpose.msra.mxu0 0
      %409 = vmatprep.subr.bf16.mxu0 0
      %410 = vmatpush1.bf16.xpose.msra.mxu0 0
      %411 = vmatprep.subr.bf16.mxu0 0
      %412 = vmatpush1.bf16.xpose.msra.mxu0 0
      %413 = vmatprep.subr.bf16.mxu0 0
      %414 = vmatpush1.bf16.xpose.msra.mxu0 0
      %415 = vmatprep.subr.bf16.mxu0 0
      %416 = vmatpush1.bf16.xpose.msra.mxu0 0
      %417 = vmatprep.subr.bf16.mxu0 0
      %418 = vmatpush1.bf16.xpose.msra.mxu0 0
      %419 = vmatprep.subr.bf16.mxu0 0
      %420 = vmatpush1.bf16.xpose.msra.mxu0 %v403
      %421 = vmatprep.subr.bf16.mxu0 0
      %422 = vmatpush2.bf16.xpose.msra.mxu0 0
      %423 = vmatprep.subr.bf16.mxu0 0
      %424 = vmatpush2.bf16.xpose.msra.mxu0 0
      %425 = vmatprep.subr.bf16.mxu0 0
      %426 = vmatpush2.bf16.xpose.msra.mxu0 0
      %427 = vmatprep.subr.bf16.mxu0 0
      %428 = vmatpush2.bf16.xpose.msra.mxu0 0
      %429 = vmatprep.subr.bf16.mxu0 0
      %430 = vmatpush2.bf16.xpose.msra.mxu0 0
      %431 = vmatprep.subr.bf16.mxu0 0
      %432 = vmatpush2.bf16.xpose.msra.mxu0 0
      %433 = vmatprep.subr.bf16.mxu0 0
      %434 = vmatpush2.bf16.xpose.msra.mxu0 0
      %435 = vmatprep.subr.bf16.mxu0 0
      %436 = vmatpush2.bf16.xpose.msra.mxu0 0
      %437 = vmatprep.mubr.bf16.mxu0 0
      %438 = vmatmul.mubr.bf16.gmra.mxu0 %v400
      %v439 = vpop.f32.mrf.mxu0
      %v440 = vadd.f32 %v281, %v439
      %v441 = vpop.f32.mrf.mxu0
      %v442 = vpop.f32.mrf.mxu0
      %v443 = vpop.f32.mrf.mxu0
      %444 = vdwg.mxu0
      %v445 = vsel %vm283, %v440, -inf
      %446 = vmax.xlane.f32.xlu0 %v445
      %v447 = vpop.xlane.xlu0 %446
      %v448 = vsub.f32 %v440, %v447
      %v449 = vmul.f32 %v448, 1.442695
      %v450 = vpow.pop %v449
      %v451 = vsel %vm283, %v450, 0.0
      %452 = vadd.xlane.f32.xlu0 %v451
      %v453 = vpop.xlane.xlu0 %452
      %v454 = vpack.c.bf16 %v450, %v450
      %v456 = vunpack.c.l.b16 %v275
      %v457 = vpack.c.b16 %v456, %v456
      %458 = vrot.lane.b32.xlu0 %v457, 120
      %v459 = vpop.permute.xlu0 %458
      %v461 = vsel %vm283, %v454, 0
      %v464 = vsel %vm343, %v459, 0
      %466 = vmatprep.subr.bf16.mxu0 0
      %467 = vmatpush1.bf16.msra.mxu0 0
      %468 = vmatprep.subr.bf16.mxu0 0
      %469 = vmatpush1.bf16.msra.mxu0 0
      %470 = vmatprep.subr.bf16.mxu0 0
      %471 = vmatpush1.bf16.msra.mxu0 0
      %472 = vmatprep.subr.bf16.mxu0 0
      %473 = vmatpush1.bf16.msra.mxu0 0
      %474 = vmatprep.subr.bf16.mxu0 0
      %475 = vmatpush1.bf16.msra.mxu0 0
      %476 = vmatprep.subr.bf16.mxu0 0
      %477 = vmatpush1.bf16.msra.mxu0 0
      %478 = vmatprep.subr.bf16.mxu0 0
      %479 = vmatpush1.bf16.msra.mxu0 0
      %480 = vmatprep.subr.bf16.mxu0 0
      %481 = vmatpush1.bf16.msra.mxu0 %v464
      %482 = vmatprep.subr.bf16.mxu0 0
      %483 = vmatpush2.bf16.msra.mxu0 0
      %484 = vmatprep.subr.bf16.mxu0 0
      %485 = vmatpush2.bf16.msra.mxu0 0
      %486 = vmatprep.subr.bf16.mxu0 0
      %487 = vmatpush2.bf16.msra.mxu0 0
      %488 = vmatprep.subr.bf16.mxu0 0
      %489 = vmatpush2.bf16.msra.mxu0 0
      %490 = vmatprep.subr.bf16.mxu0 0
      %491 = vmatpush2.bf16.msra.mxu0 0
      %492 = vmatprep.subr.bf16.mxu0 0
      %493 = vmatpush2.bf16.msra.mxu0 0
      %494 = vmatprep.subr.bf16.mxu0 0
      %495 = vmatpush2.bf16.msra.mxu0 0
      %496 = vmatprep.subr.bf16.mxu0 0
      %497 = vmatpush2.bf16.msra.mxu0 0
      %498 = vmatprep.mubr.bf16.mxu0 0
      %499 = vmatmul.mubr.bf16.gmra.mxu0 %v461
      %v500 = vpop.f32.mrf.mxu0
      %v501 = vadd.f32 0.0, %v500
      %v502 = vpop.f32.mrf.mxu0
      %v503 = vpop.f32.mrf.mxu0
      %v504 = vpop.f32.mrf.mxu0
      %505 = vdwg.mxu0
      %v506 = vrcp.pop %v453
      %v507 = vmul.f32 %v501, %v506
      %508 = vrot.lane.b32.xlu0 %v391, 112
      %v509 = vpop.permute.xlu0 %508
      %510 = vrot.lane.b32.xlu0 %v396, 112
      %v511 = vpop.permute.xlu0 %510
      %v513 = vsel %vm283, %v509, 0
      %v516 = vsel %vm283, %v511, 0
      %518 = vmatprep.subr.bf16.mxu0 0
      %519 = vmatpush1.bf16.xpose.msra.mxu0 0
      %520 = vmatprep.subr.bf16.mxu0 0
      %521 = vmatpush1.bf16.xpose.msra.mxu0 0
      %522 = vmatprep.subr.bf16.mxu0 0
      %523 = vmatpush1.bf16.xpose.msra.mxu0 0
      %524 = vmatprep.subr.bf16.mxu0 0
      %525 = vmatpush1.bf16.xpose.msra.mxu0 0
      %526 = vmatprep.subr.bf16.mxu0 0
      %527 = vmatpush1.bf16.xpose.msra.mxu0 0
      %528 = vmatprep.subr.bf16.mxu0 0
      %529 = vmatpush1.bf16.xpose.msra.mxu0 0
      %530 = vmatprep.subr.bf16.mxu0 0
      %531 = vmatpush1.bf16.xpose.msra.mxu0 0
      %532 = vmatprep.subr.bf16.mxu0 0
      %533 = vmatpush1.bf16.xpose.msra.mxu0 %v516
      %534 = vmatprep.subr.bf16.mxu0 0
      %535 = vmatpush2.bf16.xpose.msra.mxu0 0
      %536 = vmatprep.subr.bf16.mxu0 0
      %537 = vmatpush2.bf16.xpose.msra.mxu0 0
      %538 = vmatprep.subr.bf16.mxu0 0
      %539 = vmatpush2.bf16.xpose.msra.mxu0 0
      %540 = vmatprep.subr.bf16.mxu0 0
      %541 = vmatpush2.bf16.xpose.msra.mxu0 0
      %542 = vmatprep.subr.bf16.mxu0 0
      %543 = vmatpush2.bf16.xpose.msra.mxu0 0
      %544 = vmatprep.subr.bf16.mxu0 0
      %545 = vmatpush2.bf16.xpose.msra.mxu0 0
      %546 = vmatprep.subr.bf16.mxu0 0
      %547 = vmatpush2.bf16.xpose.msra.mxu0 0
      %548 = vmatprep.subr.bf16.mxu0 0
      %549 = vmatpush2.bf16.xpose.msra.mxu0 0
      %550 = vmatprep.mubr.bf16.mxu0 0
      %551 = vmatmul.mubr.bf16.gmra.mxu0 %v513
      %v552 = vpop.f32.mrf.mxu0
      %v553 = vadd.f32 %v281, %v552
      %v554 = vpop.f32.mrf.mxu0
      %v555 = vpop.f32.mrf.mxu0
      %v556 = vpop.f32.mrf.mxu0
      %557 = vdwg.mxu0
      %v558 = vsel %vm283, %v553, -inf
      %559 = vmax.xlane.f32.xlu0 %v558
      %v560 = vpop.xlane.xlu0 %559
      %v561 = vsub.f32 %v553, %v560
      %v562 = vmul.f32 %v561, 1.442695
      %v563 = vpow.pop %v562
      %v564 = vsel %vm283, %v563, 0.0
      %565 = vadd.xlane.f32.xlu0 %v564
      %v566 = vpop.xlane.xlu0 %565
      %v567 = vpack.c.bf16 %v563, %v563
      %568 = vrot.lane.b32.xlu0 %v457, 112
      %v569 = vpop.permute.xlu0 %568
      %v571 = vsel %vm283, %v567, 0
      %v574 = vsel %vm343, %v569, 0
      %576 = vmatprep.subr.bf16.mxu0 0
      %577 = vmatpush1.bf16.msra.mxu0 0
      %578 = vmatprep.subr.bf16.mxu0 0
      %579 = vmatpush1.bf16.msra.mxu0 0
      %580 = vmatprep.subr.bf16.mxu0 0
      %581 = vmatpush1.bf16.msra.mxu0 0
      %582 = vmatprep.subr.bf16.mxu0 0
      %583 = vmatpush1.bf16.msra.mxu0 0
      %584 = vmatprep.subr.bf16.mxu0 0
      %585 = vmatpush1.bf16.msra.mxu0 0
      %586 = vmatprep.subr.bf16.mxu0 0
      %587 = vmatpush1.bf16.msra.mxu0 0
      %588 = vmatprep.subr.bf16.mxu0 0
      %589 = vmatpush1.bf16.msra.mxu0 0
      %590 = vmatprep.subr.bf16.mxu0 0
      %591 = vmatpush1.bf16.msra.mxu0 %v574
      %592 = vmatprep.subr.bf16.mxu0 0
      %593 = vmatpush2.bf16.msra.mxu0 0
      %594 = vmatprep.subr.bf16.mxu0 0
      %595 = vmatpush2.bf16.msra.mxu0 0
      %596 = vmatprep.subr.bf16.mxu0 0
      %597 = vmatpush2.bf16.msra.mxu0 0
      %598 = vmatprep.subr.bf16.mxu0 0
      %599 = vmatpush2.bf16.msra.mxu0 0
      %600 = vmatprep.subr.bf16.mxu0 0
      %601 = vmatpush2.bf16.msra.mxu0 0
      %602 = vmatprep.subr.bf16.mxu0 0
      %603 = vmatpush2.bf16.msra.mxu0 0
      %604 = vmatprep.subr.bf16.mxu0 0
      %605 = vmatpush2.bf16.msra.mxu0 0
      %606 = vmatprep.subr.bf16.mxu0 0
      %607 = vmatpush2.bf16.msra.mxu0 0
      %608 = vmatprep.mubr.bf16.mxu0 0
      %609 = vmatmul.mubr.bf16.gmra.mxu0 %v571
      %v610 = vpop.f32.mrf.mxu0
      %v611 = vadd.f32 0.0, %v610
      %v612 = vpop.f32.mrf.mxu0
      %v613 = vpop.f32.mrf.mxu0
      %v614 = vpop.f32.mrf.mxu0
      %615 = vdwg.mxu0
      %v616 = vrcp.pop %v566
      %v617 = vmul.f32 %v611, %v616
      %618 = vrot.lane.b32.xlu0 %v391, 104
      %v619 = vpop.permute.xlu0 %618
      %620 = vrot.lane.b32.xlu0 %v396, 104
      %v621 = vpop.permute.xlu0 %620
      %v623 = vsel %vm283, %v619, 0
      %v626 = vsel %vm283, %v621, 0
      %628 = vmatprep.subr.bf16.mxu0 0
      %629 = vmatpush1.bf16.xpose.msra.mxu0 0
      %630 = vmatprep.subr.bf16.mxu0 0
      %631 = vmatpush1.bf16.xpose.msra.mxu0 0
      %632 = vmatprep.subr.bf16.mxu0 0
      %633 = vmatpush1.bf16.xpose.msra.mxu0 0
      %634 = vmatprep.subr.bf16.mxu0 0
      %635 = vmatpush1.bf16.xpose.msra.mxu0 0
      %636 = vmatprep.subr.bf16.mxu0 0
      %637 = vmatpush1.bf16.xpose.msra.mxu0 0
      %638 = vmatprep.subr.bf16.mxu0 0
      %639 = vmatpush1.bf16.xpose.msra.mxu0 0
      %640 = vmatprep.subr.bf16.mxu0 0
      %641 = vmatpush1.bf16.xpose.msra.mxu0 0
      %642 = vmatprep.subr.bf16.mxu0 0
      %643 = vmatpush1.bf16.xpose.msra.mxu0 %v626
      %644 = vmatprep.subr.bf16.mxu0 0
      %645 = vmatpush2.bf16.xpose.msra.mxu0 0
      %646 = vmatprep.subr.bf16.mxu0 0
      %647 = vmatpush2.bf16.xpose.msra.mxu0 0
      %648 = vmatprep.subr.bf16.mxu0 0
      %649 = vmatpush2.bf16.xpose.msra.mxu0 0
      %650 = vmatprep.subr.bf16.mxu0 0
      %651 = vmatpush2.bf16.xpose.msra.mxu0 0
      %652 = vmatprep.subr.bf16.mxu0 0
      %653 = vmatpush2.bf16.xpose.msra.mxu0 0
      %654 = vmatprep.subr.bf16.mxu0 0
      %655 = vmatpush2.bf16.xpose.msra.mxu0 0
      %656 = vmatprep.subr.bf16.mxu0 0
      %657 = vmatpush2.bf16.xpose.msra.mxu0 0
      %658 = vmatprep.subr.bf16.mxu0 0
      %659 = vmatpush2.bf16.xpose.msra.mxu0 0
      %660 = vmatprep.mubr.bf16.mxu0 0
      %661 = vmatmul.mubr.bf16.gmra.mxu0 %v623
      %v662 = vpop.f32.mrf.mxu0
      %v663 = vadd.f32 %v281, %v662
      %v664 = vpop.f32.mrf.mxu0
      %v665 = vpop.f32.mrf.mxu0
      %v666 = vpop.f32.mrf.mxu0
      %667 = vdwg.mxu0
      %v668 = vsel %vm283, %v663, -inf
      %669 = vmax.xlane.f32.xlu0 %v668
      %v670 = vpop.xlane.xlu0 %669
      %v671 = vsub.f32 %v663, %v670
      %v672 = vmul.f32 %v671, 1.442695
      %v673 = vpow.pop %v672
      %v674 = vsel %vm283, %v673, 0.0
      %675 = vadd.xlane.f32.xlu0 %v674
      %v676 = vpop.xlane.xlu0 %675
      %v677 = vpack.c.bf16 %v673, %v673
      %678 = vrot.lane.b32.xlu0 %v457, 104
      %v679 = vpop.permute.xlu0 %678
      %v681 = vsel %vm283, %v677, 0
      %v684 = vsel %vm343, %v679, 0
      %686 = vmatprep.subr.bf16.mxu0 0
      %687 = vmatpush1.bf16.msra.mxu0 0
      %688 = vmatprep.subr.bf16.mxu0 0
      %689 = vmatpush1.bf16.msra.mxu0 0
      %690 = vmatprep.subr.bf16.mxu0 0
      %691 = vmatpush1.bf16.msra.mxu0 0
      %692 = vmatprep.subr.bf16.mxu0 0
      %693 = vmatpush1.bf16.msra.mxu0 0
      %694 = vmatprep.subr.bf16.mxu0 0
      %695 = vmatpush1.bf16.msra.mxu0 0
      %696 = vmatprep.subr.bf16.mxu0 0
      %697 = vmatpush1.bf16.msra.mxu0 0
      %698 = vmatprep.subr.bf16.mxu0 0
      %699 = vmatpush1.bf16.msra.mxu0 0
      %700 = vmatprep.subr.bf16.mxu0 0
      %701 = vmatpush1.bf16.msra.mxu0 %v684
      %702 = vmatprep.subr.bf16.mxu0 0
      %703 = vmatpush2.bf16.msra.mxu0 0
      %704 = vmatprep.subr.bf16.mxu0 0
      %705 = vmatpush2.bf16.msra.mxu0 0
      %706 = vmatprep.subr.bf16.mxu0 0
      %707 = vmatpush2.bf16.msra.mxu0 0
      %708 = vmatprep.subr.bf16.mxu0 0
      %709 = vmatpush2.bf16.msra.mxu0 0
      %710 = vmatprep.subr.bf16.mxu0 0
      %711 = vmatpush2.bf16.msra.mxu0 0
      %712 = vmatprep.subr.bf16.mxu0 0
      %713 = vmatpush2.bf16.msra.mxu0 0
      %714 = vmatprep.subr.bf16.mxu0 0
      %715 = vmatpush2.bf16.msra.mxu0 0
      %716 = vmatprep.subr.bf16.mxu0 0
      %717 = vmatpush2.bf16.msra.mxu0 0
      %718 = vmatprep.mubr.bf16.mxu0 0
      %719 = vmatmul.mubr.bf16.gmra.mxu0 %v681
      %v720 = vpop.f32.mrf.mxu0
      %v721 = vadd.f32 0.0, %v720
      %v722 = vpop.f32.mrf.mxu0
      %v723 = vpop.f32.mrf.mxu0
      %v724 = vpop.f32.mrf.mxu0
      %725 = vdwg.mxu0
      %v726 = vrcp.pop %v676
      %v727 = vmul.f32 %v721, %v726
      %729 = vrot.lane.b32.xlu0 %v507, 8
      %v730 = vpop.permute.xlu0 %729
      %733 = vrot.lane.b32.xlu0 %v617, 16
      %v734 = vpop.permute.xlu0 %733
      %737 = vrot.lane.b32.xlu0 %v727, 24
      %v738 = vpop.permute.xlu0 %737
      %v740 = vsel %vm283, %v388, %v730
      %vm741 = vcmask 130048
      %v742 = vsel %vm741, %v740, %v734
      %vm743 = vcmask 195584
      %v744 = vsel %vm743, %v742, %v738
      %v745 = vpack.c.bf16 %v744, %v744
      %vm746 = vcmask 257024
      %747 = vst.msk [vmem:[%s271] sm:$0xf] %vm746, %v745
      %p748 = scmp.lt.s32.totalorder %s19, 1
      %s749 = scalar_select %p748, %s19, 1
      %p750 = scmp.lt.s32.totalorder %s20, 0
      %s751 = scalar_select %p750, %s20, 0
      %s752 = sadd.s32 %s751, %s749
      %s753 = smul.addr %s752, 4
      %s754 = scalar_lea.vmem %s4, %s753
      // Predicated region
      $region37: #{flash_att_encoder.11} parent=35 // pred_check
        %p755 = pneg %p153
      $region38: #{flash_att_encoder.11} parent=35 // pred_check_branch
        %757 = sbr.rel (%p755) target = $region40
      $region39: #{flash_att_encoder.11} parent=35 // pred_region
        _
      $region40: #{flash_att_encoder.11} parent=35 // pred_fallthru
        _
    $region36: #{flash_att_encoder.11} parent=5 // pred_fallthru
      _
    %p758 = scmp.le.s32.totalorder 2, %s10
    // Predicated region
    $region41: #{flash_att_encoder.11} parent=5 // pred_check
      %p759 = pneg %p758
    $region42: #{flash_att_encoder.11} parent=5 // pred_check_branch
      %761 = sbr.rel (%p759) target = $region44
    $region43: #{flash_att_encoder.11} parent=5 // pred_region
      %s762 = ssub.s32 %s10, 2
      // Predicated region
      $region45: #{flash_att_encoder.11} parent=43 // pred_check
        %p763 = pneg %p159
      $region46: #{flash_att_encoder.11} parent=43 // pred_check_branch
        %765 = sbr.rel (%p763) target = $region48
      $region47: #{flash_att_encoder.11} parent=43 // pred_region
        %p766 = scmp.lt.s32.totalorder %s21, 1
        %s767 = scalar_select %p766, %s21, 1
        %p768 = scmp.lt.s32.totalorder %s22, 0
        %s769 = scalar_select %p768, %s22, 0
        %s770 = sadd.s32 %s769, %s767
        %s771 = smul.addr %s770, 4
        %s772 = scalar_lea.vmem %s4, %s771
      $region48: #{flash_att_encoder.11} parent=43 // pred_fallthru
        _
    $region44: #{flash_att_encoder.11} parent=5 // pred_fallthru
      _
  $region6: #{flash_att_encoder.11} parent=0 // loop_footer
    %s14 = sadd.s32 1, %s10
  $region7: #{flash_att_encoder.11} parent=0 // loop_footer_branch
    %9 = sbr.rel target = $region3
  $region8: #{flash_att_encoder.11} parent=0 // loop_exit
    _

// kernel: flash_att_encoder.13
$region0: #{flash_att_encoder.13}
  #allocation0 [shape = 'u32[]', space=smem, size = 0x4, offset = 0x4, fixed_abs, tag = 'smem constant byte address 0x4 - core index']
  #allocation1 [shape = 'u32[144,128]{1,0:T(1,128)}', space=vmem, size = 0x12000, scoped, tag = 'internal scratch']
  %s0 = inlined_call_operand.vmem [shape: bf16[16,32], index: 0, kind: input, shape index: {}]
  %s1 = inlined_call_operand.vmem [shape: bf16[32,64], index: 1, kind: input, shape index: {}]
  %s2 = inlined_call_operand.vmem [shape: f32[1,64], index: 2, kind: input, shape index: {}]
  %s3 = inlined_call_operand.vmem [shape: bf16[16,64], index: 3, kind: output, shape index: {}]
  %s4 = sld [smem:[#allocation0]]
  $region22: #{flash_att_encoder.13} parent=0
    _
  %s6 = ssub.s32 1, %s4
  %s7 = scalar_select 0, %s6, %s4
  // Predicated region
  $region2: #{flash_att_encoder.13} parent=0 // pred_check
    _
  $region3: #{flash_att_encoder.13} parent=0 // pred_check_branch
    %9 = sbr.rel (0) target = $region5
  $region4: #{flash_att_encoder.13} parent=0 // pred_region
    _
  $region5: #{flash_att_encoder.13} parent=0 // pred_fallthru
    _
  // Predicated region
  $region6: #{flash_att_encoder.13} parent=0 // pred_check
    _
  $region7: #{flash_att_encoder.13} parent=0 // pred_check_branch
    %11 = sbr.rel (0) target = $region9
  $region8: #{flash_att_encoder.13} parent=0 // pred_region
    _
  $region9: #{flash_att_encoder.13} parent=0 // pred_fallthru
    _
  // Predicated region
  $region10: #{flash_att_encoder.13} parent=0 // pred_check
    _
  $region11: #{flash_att_encoder.13} parent=0 // pred_check_branch
    %13 = sbr.rel (0) target = $region13
  $region12: #{flash_att_encoder.13} parent=0 // pred_region
    _
  $region13: #{flash_att_encoder.13} parent=0 // pred_fallthru
    _
  %v15 = vld [vmem:[%s0] sm:$0xf]
  %v16 = vld [vmem:[%s0 + $0x4] sm:$0xf]
  %v17 = vld [vmem:[%s1] sm:$0xf]
  %v18 = vld [vmem:[%s1 + $0x4] sm:$0xf]
  %v19 = vld [vmem:[%s1 + $0x8] sm:$0xf]
  %v20 = vld [vmem:[%s1 + $0xc] sm:$0xf]
  %v21 = vld [vmem:[%s2] sm:$0x1]
  %v23 = vlaneseq
  %v24 = vshrl.u32 %v23, 7
  %v25 = vsub.s32 0, %v24
  %v26 = vrot.slane %v21, %v25
  %v30 = vunpack.c.l.b16 %v15
  %v31 = vunpack.c.l.b16 %v16
  %v32 = vpack.c.b16 %v31, %v30
  %v37 = vunpack.c.l.b16 %v17
  %v38 = vunpack.c.l.b16 %v18
  %v39 = vunpack.c.l.b16 %v19
  %v40 = vunpack.c.l.b16 %v20
  %v41 = vpack.c.b16 %v38, %v37
  %v42 = vpack.c.b16 %v40, %v39
  %vm45 = vcmask 261120
  %v47 = vsel %vm45, %v32, 0
  %49 = vmatprep.subr.bf16.mxu0 0
  %50 = vmatpush1.bf16.msra.mxu0 0
  %51 = vmatprep.subr.bf16.mxu0 0
  %52 = vmatpush1.bf16.msra.mxu0 0
  %53 = vmatprep.subr.bf16.mxu0 0
  %54 = vmatpush1.bf16.msra.mxu0 0
  %55 = vmatprep.subr.bf16.mxu0 0
  %56 = vmatpush1.bf16.msra.mxu0 0
  %57 = vmatprep.subr.bf16.mxu0 0
  %58 = vmatpush1.bf16.msra.mxu0 0
  %59 = vmatprep.subr.bf16.mxu0 0
  %60 = vmatpush1.bf16.msra.mxu0 0
  %61 = vmatprep.subr.bf16.mxu0 0
  %62 = vmatpush1.bf16.msra.mxu0 %v42
  %63 = vmatprep.subr.bf16.mxu0 0
  %64 = vmatpush1.bf16.msra.mxu0 %v41
  %65 = vmatprep.subr.bf16.mxu0 0
  %66 = vmatpush2.bf16.msra.mxu0 0
  %67 = vmatprep.subr.bf16.mxu0 0
  %68 = vmatpush2.bf16.msra.mxu0 0
  %69 = vmatprep.subr.bf16.mxu0 0
  %70 = vmatpush2.bf16.msra.mxu0 0
  %71 = vmatprep.subr.bf16.mxu0 0
  %72 = vmatpush2.bf16.msra.mxu0 0
  %73 = vmatprep.subr.bf16.mxu0 0
  %74 = vmatpush2.bf16.msra.mxu0 0
  %75 = vmatprep.subr.bf16.mxu0 0
  %76 = vmatpush2.bf16.msra.mxu0 0
  %77 = vmatprep.subr.bf16.mxu0 0
  %78 = vmatpush2.bf16.msra.mxu0 0
  %79 = vmatprep.subr.bf16.mxu0 0
  %80 = vmatpush2.bf16.msra.mxu0 0
  %81 = vmatprep.mubr.bf16.mxu0 0
  %82 = vmatmul.mubr.bf16.gmra.mxu0 %v47
  %v83 = vpop.f32.mrf.mxu0
  %v84 = vadd.f32 %v26, %v83
  %v85 = vpop.f32.mrf.mxu0
  %v86 = vpop.f32.mrf.mxu0
  %v87 = vadd.f32 %v26, %v86
  %v88 = vpop.f32.mrf.mxu0
  %89 = vdwg.mxu0
  %v90 = vmul.f32 %v84, 0.5
  %v91 = vmul.f32 %v87, 0.5
  %v92 = vmul.f32 %v84, 0.044715
  %v93 = vmul.f32 %v87, 0.044715
  %v94 = vmul.f32 %v92, %v84
  %v95 = vmul.f32 %v93, %v87
  %v96 = vmul.f32 %v94, %v84
  %v97 = vmul.f32 %v95, %v87
  %v98 = vadd.f32 %v84, %v96
  %v99 = vadd.f32 %v87, %v97
  %v100 = vmul.f32 %v98, 0.7978846
  %v101 = vmul.f32 %v99, 0.7978846
  %v102 = vtanh.pop %v100
  %v103 = vtanh.pop %v101
  %v104 = vadd.f32 %v102, 1.0
  %v105 = vadd.f32 %v103, 1.0
  %v106 = vmul.f32 %v90, %v104
  %v107 = vmul.f32 %v91, %v105
  %v108 = vpack.c.bf16 %v107, %v106
  %v110 = vunpack.c.l.b16 %v108
  %v111 = vunpack.c.h.b16 %v108
  %v112 = vpack.c.b16 %v110, %v110
  %v113 = vpack.c.b16 %v111, %v111
  %vm116 = vcmask 519168
  %117 = vst.msk [vmem:[%s3] sm:$0xf] %vm116, %v112
  %118 = vst.msk [vmem:[%s3 + $0x4] sm:$0xf] %vm116, %v113
  // Predicated region
  $region14: #{flash_att_encoder.13} parent=0 // pred_check
    _
  $region15: #{flash_att_encoder.13} parent=0 // pred_check_branch
    %120 = sbr.rel (0) target = $region17
  $region16: #{flash_att_encoder.13} parent=0 // pred_region
    _
  $region17: #{flash_att_encoder.13} parent=0 // pred_fallthru
    _
  // Predicated region
  $region18: #{flash_att_encoder.13} parent=0 // pred_check
    _
  $region19: #{flash_att_encoder.13} parent=0 // pred_check_branch
    %122 = sbr.rel (0) target = $region21
  $region20: #{flash_att_encoder.13} parent=0 // pred_region
    _
  $region21: #{flash_att_encoder.13} parent=0 // pred_fallthru
    _

// kernel: flash_att_encoder.12
$region0: #{flash_att_encoder.12}
  #allocation0 [shape = 'u32[]', space=smem, size = 0x4, offset = 0x4, fixed_abs, tag = 'smem constant byte address 0x4 - core index']
  #allocation1 [shape = 'u32[144,128]{1,0:T(1,128)}', space=vmem, size = 0x12000, scoped, tag = 'internal scratch']
  %s0 = inlined_call_operand.vmem [shape: bf16[16,32], index: 0, kind: input, shape index: {}]
  %s1 = inlined_call_operand.vmem [shape: bf16[32,32], index: 1, kind: input, shape index: {}]
  %s2 = inlined_call_operand.vmem [shape: f32[1,32], index: 2, kind: input, shape index: {}]
  %s3 = inlined_call_operand.vmem [shape: bf16[16,32], index: 3, kind: input, shape index: {}]
  %s4 = inlined_call_operand.vmem [shape: f32[1,32], index: 4, kind: input, shape index: {}]
  %s5 = inlined_call_operand.vmem [shape: f32[1,32], index: 5, kind: input, shape index: {}]
  %s6 = inlined_call_operand.vmem [shape: bf16[16,32], index: 6, kind: output, shape index: {}]
  %s7 = sld [smem:[#allocation0]]
  $region34: #{flash_att_encoder.12} parent=0
    _
  %s9 = ssub.s32 1, %s7
  %s10 = scalar_select 0, %s9, %s7
  // Predicated region
  $region2: #{flash_att_encoder.12} parent=0 // pred_check
    _
  $region3: #{flash_att_encoder.12} parent=0 // pred_check_branch
    %12 = sbr.rel (0) target = $region5
  $region4: #{flash_att_encoder.12} parent=0 // pred_region
    _
  $region5: #{flash_att_encoder.12} parent=0 // pred_fallthru
    _
  // Predicated region
  $region6: #{flash_att_encoder.12} parent=0 // pred_check
    _
  $region7: #{flash_att_encoder.12} parent=0 // pred_check_branch
    %14 = sbr.rel (0) target = $region9
  $region8: #{flash_att_encoder.12} parent=0 // pred_region
    _
  $region9: #{flash_att_encoder.12} parent=0 // pred_fallthru
    _
  // Predicated region
  $region10: #{flash_att_encoder.12} parent=0 // pred_check
    _
  $region11: #{flash_att_encoder.12} parent=0 // pred_check_branch
    %16 = sbr.rel (0) target = $region13
  $region12: #{flash_att_encoder.12} parent=0 // pred_region
    _
  $region13: #{flash_att_encoder.12} parent=0 // pred_fallthru
    _
  // Predicated region
  $region14: #{flash_att_encoder.12} parent=0 // pred_check
    _
  $region15: #{flash_att_encoder.12} parent=0 // pred_check_branch
    %18 = sbr.rel (0) target = $region17
  $region16: #{flash_att_encoder.12} parent=0 // pred_region
    _
  $region17: #{flash_att_encoder.12} parent=0 // pred_fallthru
    _
  // Predicated region
  $region18: #{flash_att_encoder.12} parent=0 // pred_check
    _
  $region19: #{flash_att_encoder.12} parent=0 // pred_check_branch
    %20 = sbr.rel (0) target = $region21
  $region20: #{flash_att_encoder.12} parent=0 // pred_region
    _
  $region21: #{flash_att_encoder.12} parent=0 // pred_fallthru
    _
  // Predicated region
  $region22: #{flash_att_encoder.12} parent=0 // pred_check
    _
  $region23: #{flash_att_encoder.12} parent=0 // pred_check_branch
    %22 = sbr.rel (0) target = $region25
  $region24: #{flash_att_encoder.12} parent=0 // pred_region
    _
  $region25: #{flash_att_encoder.12} parent=0 // pred_fallthru
    _
  %v24 = vld [vmem:[%s0] sm:$0xf]
  %v25 = vld [vmem:[%s0 + $0x4] sm:$0xf]
  %v26 = vld [vmem:[%s1] sm:$0xf]
  %v27 = vld [vmem:[%s1 + $0x4] sm:$0xf]
  %v28 = vld [vmem:[%s1 + $0x8] sm:$0xf]
  %v29 = vld [vmem:[%s1 + $0xc] sm:$0xf]
  %v30 = vld [vmem:[%s2] sm:$0x1]
  %v32 = vlaneseq
  %v33 = vshrl.u32 %v32, 7
  %v34 = vsub.s32 0, %v33
  %v35 = vrot.slane %v30, %v34
  %v39 = vunpack.c.l.b16 %v24
  %v40 = vunpack.c.l.b16 %v25
  %v41 = vpack.c.b16 %v40, %v39
  %v46 = vunpack.c.l.b16 %v26
  %v47 = vunpack.c.l.b16 %v27
  %v48 = vunpack.c.l.b16 %v28
  %v49 = vunpack.c.l.b16 %v29
  %v50 = vpack.c.b16 %v47, %v46
  %v51 = vpack.c.b16 %v49, %v48
  %vm54 = vcmask 261120
  %v56 = vsel %vm54, %v41, 0
  %58 = vmatprep.subr.bf16.mxu0 0
  %59 = vmatpush1.bf16.msra.mxu0 0
  %60 = vmatprep.subr.bf16.mxu0 0
  %61 = vmatpush1.bf16.msra.mxu0 0
  %62 = vmatprep.subr.bf16.mxu0 0
  %63 = vmatpush1.bf16.msra.mxu0 0
  %64 = vmatprep.subr.bf16.mxu0 0
  %65 = vmatpush1.bf16.msra.mxu0 0
  %66 = vmatprep.subr.bf16.mxu0 0
  %67 = vmatpush1.bf16.msra.mxu0 0
  %68 = vmatprep.subr.bf16.mxu0 0
  %69 = vmatpush1.bf16.msra.mxu0 0
  %70 = vmatprep.subr.bf16.mxu0 0
  %71 = vmatpush1.bf16.msra.mxu0 %v51
  %72 = vmatprep.subr.bf16.mxu0 0
  %73 = vmatpush1.bf16.msra.mxu0 %v50
  %74 = vmatprep.subr.bf16.mxu0 0
  %75 = vmatpush2.bf16.msra.mxu0 0
  %76 = vmatprep.subr.bf16.mxu0 0
  %77 = vmatpush2.bf16.msra.mxu0 0
  %78 = vmatprep.subr.bf16.mxu0 0
  %79 = vmatpush2.bf16.msra.mxu0 0
  %80 = vmatprep.subr.bf16.mxu0 0
  %81 = vmatpush2.bf16.msra.mxu0 0
  %82 = vmatprep.subr.bf16.mxu0 0
  %83 = vmatpush2.bf16.msra.mxu0 0
  %84 = vmatprep.subr.bf16.mxu0 0
  %85 = vmatpush2.bf16.msra.mxu0 0
  %86 = vmatprep.subr.bf16.mxu0 0
  %87 = vmatpush2.bf16.msra.mxu0 0
  %88 = vmatprep.subr.bf16.mxu0 0
  %89 = vmatpush2.bf16.msra.mxu0 0
  %90 = vmatprep.mubr.bf16.mxu0 0
  %91 = vmatmul.mubr.bf16.gmra.mxu0 %v56
  %v92 = vpop.f32.mrf.mxu0
  %v93 = vadd.f32 %v35, %v92
  %v94 = vpop.f32.mrf.mxu0
  %v95 = vpop.f32.mrf.mxu0
  %v96 = vadd.f32 %v35, %v95
  %v97 = vpop.f32.mrf.mxu0
  %98 = vdwg.mxu0
  %v99 = vld [vmem:[%s3] sm:$0xf]
  %v100 = vld [vmem:[%s3 + $0x4] sm:$0xf]
  %v101 = vunpack.c.l.bf16 %v99
  %v102 = vunpack.c.l.bf16 %v100
  %v103 = vadd.f32 %v93, %v101
  %v104 = vadd.f32 %v96, %v102
  %v105 = vsel %vm54, %v103, 0.0
  %106 = vadd.xlane.f32.xlu0 %v105
  %v107 = vpop.xlane.xlu0 %106
  %v108 = vsel %vm54, %v104, 0.0
  %109 = vadd.xlane.f32.xlu0 %v108
  %v110 = vpop.xlane.xlu0 %109
  %v111 = vrcp.pop 32.0
  %v112 = vmul.f32 %v107, %v111
  %v113 = vmul.f32 %v110, %v111
  %v114 = vsub.f32 %v103, %v112
  %v115 = vsub.f32 %v104, %v113
  %v116 = vmul.f32 %v114, %v114
  %v117 = vmul.f32 %v115, %v115
  %v118 = vsel %vm54, %v116, 0.0
  %119 = vadd.xlane.f32.xlu0 %v118
  %v120 = vpop.xlane.xlu0 %119
  %v121 = vsel %vm54, %v117, 0.0
  %122 = vadd.xlane.f32.xlu0 %v121
  %v123 = vpop.xlane.xlu0 %122
  %v124 = vmul.f32 %v120, %v111
  %v125 = vmul.f32 %v123, %v111
  %v126 = vadd.f32 %v124, 1e-12
  %v127 = vadd.f32 %v125, 1e-12
  %v128 = vrsqrt.pop %v126
  %v129 = vrsqrt.pop %v127
  %v130 = vmul.f32 %v114, %v128
  %v131 = vmul.f32 %v115, %v129
  %v132 = vld [vmem:[%s4] sm:$0x1]
  %v134 = vlaneseq
  %v135 = vshrl.u32 %v134, 7
  %v136 = vsub.s32 0, %v135
  %v137 = vrot.slane %v132, %v136
  %v139 = vmul.f32 %v130, %v137
  %v140 = vmul.f32 %v131, %v137
  %v141 = vld [vmem:[%s5] sm:$0x1]
  %v143 = vlaneseq
  %v144 = vshrl.u32 %v143, 7
  %v145 = vsub.s32 0, %v144
  %v146 = vrot.slane %v141, %v145
  %v148 = vadd.f32 %v139, %v146
  %v149 = vadd.f32 %v140, %v146
  %v150 = vpack.c.bf16 %v149, %v148
  %v152 = vunpack.c.l.b16 %v150
  %v153 = vunpack.c.h.b16 %v150
  %v154 = vpack.c.b16 %v152, %v152
  %v155 = vpack.c.b16 %v153, %v153
  %vm158 = vcmask 257024
  %159 = vst.msk [vmem:[%s6] sm:$0xf] %vm158, %v154
  %160 = vst.msk [vmem:[%s6 + $0x4] sm:$0xf] %vm158, %v155
  // Predicated region
  $region26: #{flash_att_encoder.12} parent=0 // pred_check
    _
  $region27: #{flash_att_encoder.12} parent=0 // pred_check_branch
    %162 = sbr.rel (0) target = $region29
  $region28: #{flash_att_encoder.12} parent=0 // pred_region
    _
  $region29: #{flash_att_encoder.12} parent=0 // pred_fallthru
    _
  // Predicated region
  $region30: #{flash_att_encoder.12} parent=0 // pred_check
    _
  $region31: #{flash_att_encoder.12} parent=0 // pred_check_branch
    %164 = sbr.rel (0) target = $region33
  $region32: #{flash_att_encoder.12} parent=0 // pred_region
    _
  $region33: #{flash_att_encoder.12} parent=0 // pred_fallthru
    _

// kernel: flash_att_encoder.14
$region0: #{flash_att_encoder.14}
  #allocation0 [shape = 'u32[]', space=smem, size = 0x4, offset = 0x4, fixed_abs, tag = 'smem constant byte address 0x4 - core index']
  #allocation1 [shape = 'u32[144,128]{1,0:T(1,128)}', space=vmem, size = 0x12000, scoped, tag = 'internal scratch']
  %s0 = inlined_call_operand.vmem [shape: bf16[16,64], index: 0, kind: input, shape index: {}]
  %s1 = inlined_call_operand.vmem [shape: bf16[64,32], index: 1, kind: input, shape index: {}]
  %s2 = inlined_call_operand.vmem [shape: f32[1,32], index: 2, kind: input, shape index: {}]
  %s3 = inlined_call_operand.vmem [shape: bf16[16,32], index: 3, kind: input, shape index: {}]
  %s4 = inlined_call_operand.vmem [shape: f32[1,32], index: 4, kind: input, shape index: {}]
  %s5 = inlined_call_operand.vmem [shape: f32[1,32], index: 5, kind: input, shape index: {}]
  %s6 = inlined_call_operand.vmem [shape: bf16[16,32], index: 6, kind: output, shape index: {}]
  %s7 = sld [smem:[#allocation0]]
  $region34: #{flash_att_encoder.14} parent=0
    _
  %s9 = ssub.s32 1, %s7
  %s10 = scalar_select 0, %s9, %s7
  // Predicated region
  $region2: #{flash_att_encoder.14} parent=0 // pred_check
    _
  $region3: #{flash_att_encoder.14} parent=0 // pred_check_branch
    %12 = sbr.rel (0) target = $region5
  $region4: #{flash_att_encoder.14} parent=0 // pred_region
    _
  $region5: #{flash_att_encoder.14} parent=0 // pred_fallthru
    _
  // Predicated region
  $region6: #{flash_att_encoder.14} parent=0 // pred_check
    _
  $region7: #{flash_att_encoder.14} parent=0 // pred_check_branch
    %14 = sbr.rel (0) target = $region9
  $region8: #{flash_att_encoder.14} parent=0 // pred_region
    _
  $region9: #{flash_att_encoder.14} parent=0 // pred_fallthru
    _
  // Predicated region
  $region10: #{flash_att_encoder.14} parent=0 // pred_check
    _
  $region11: #{flash_att_encoder.14} parent=0 // pred_check_branch
    %16 = sbr.rel (0) target = $region13
  $region12: #{flash_att_encoder.14} parent=0 // pred_region
    _
  $region13: #{flash_att_encoder.14} parent=0 // pred_fallthru
    _
  // Predicated region
  $region14: #{flash_att_encoder.14} parent=0 // pred_check
    _
  $region15: #{flash_att_encoder.14} parent=0 // pred_check_branch
    %18 = sbr.rel (0) target = $region17
  $region16: #{flash_att_encoder.14} parent=0 // pred_region
    _
  $region17: #{flash_att_encoder.14} parent=0 // pred_fallthru
    _
  // Predicated region
  $region18: #{flash_att_encoder.14} parent=0 // pred_check
    _
  $region19: #{flash_att_encoder.14} parent=0 // pred_check_branch
    %20 = sbr.rel (0) target = $region21
  $region20: #{flash_att_encoder.14} parent=0 // pred_region
    _
  $region21: #{flash_att_encoder.14} parent=0 // pred_fallthru
    _
  // Predicated region
  $region22: #{flash_att_encoder.14} parent=0 // pred_check
    _
  $region23: #{flash_att_encoder.14} parent=0 // pred_check_branch
    %22 = sbr.rel (0) target = $region25
  $region24: #{flash_att_encoder.14} parent=0 // pred_region
    _
  $region25: #{flash_att_encoder.14} parent=0 // pred_fallthru
    _
  %v24 = vld [vmem:[%s0] sm:$0xf]
  %v25 = vld [vmem:[%s0 + $0x4] sm:$0xf]
  %v26 = vld [vmem:[%s1] sm:$0xf]
  %v27 = vld [vmem:[%s1 + $0x4] sm:$0xf]
  %v28 = vld [vmem:[%s1 + $0x8] sm:$0xf]
  %v29 = vld [vmem:[%s1 + $0xc] sm:$0xf]
  %v30 = vld [vmem:[%s1 + $0x10] sm:$0xf]
  %v31 = vld [vmem:[%s1 + $0x14] sm:$0xf]
  %v32 = vld [vmem:[%s1 + $0x18] sm:$0xf]
  %v33 = vld [vmem:[%s1 + $0x1c] sm:$0xf]
  %v34 = vld [vmem:[%s2] sm:$0x1]
  %v36 = vlaneseq
  %v37 = vshrl.u32 %v36, 7
  %v38 = vsub.s32 0, %v37
  %v39 = vrot.slane %v34, %v38
  %v43 = vunpack.c.l.b16 %v24
  %v44 = vunpack.c.l.b16 %v25
  %v45 = vpack.c.b16 %v44, %v43
  %v54 = vunpack.c.l.b16 %v26
  %v55 = vunpack.c.l.b16 %v27
  %v56 = vunpack.c.l.b16 %v28
  %v57 = vunpack.c.l.b16 %v29
  %v58 = vunpack.c.l.b16 %v30
  %v59 = vunpack.c.l.b16 %v31
  %v60 = vunpack.c.l.b16 %v32
  %v61 = vunpack.c.l.b16 %v33
  %v62 = vpack.c.b16 %v55, %v54
  %v63 = vpack.c.b16 %v57, %v56
  %v64 = vpack.c.b16 %v59, %v58
  %v65 = vpack.c.b16 %v61, %v60
  %vm70 = vcmask 523264
  %v72 = vsel %vm70, %v45, 0
  %74 = vmatprep.subr.bf16.mxu0 0
  %75 = vmatpush1.bf16.msra.mxu0 0
  %76 = vmatprep.subr.bf16.mxu0 0
  %77 = vmatpush1.bf16.msra.mxu0 0
  %78 = vmatprep.subr.bf16.mxu0 0
  %79 = vmatpush1.bf16.msra.mxu0 0
  %80 = vmatprep.subr.bf16.mxu0 0
  %81 = vmatpush1.bf16.msra.mxu0 0
  %82 = vmatprep.subr.bf16.mxu0 0
  %83 = vmatpush1.bf16.msra.mxu0 %v65
  %84 = vmatprep.subr.bf16.mxu0 0
  %85 = vmatpush1.bf16.msra.mxu0 %v64
  %86 = vmatprep.subr.bf16.mxu0 0
  %87 = vmatpush1.bf16.msra.mxu0 %v63
  %88 = vmatprep.subr.bf16.mxu0 0
  %89 = vmatpush1.bf16.msra.mxu0 %v62
  %90 = vmatprep.subr.bf16.mxu0 0
  %91 = vmatpush2.bf16.msra.mxu0 0
  %92 = vmatprep.subr.bf16.mxu0 0
  %93 = vmatpush2.bf16.msra.mxu0 0
  %94 = vmatprep.subr.bf16.mxu0 0
  %95 = vmatpush2.bf16.msra.mxu0 0
  %96 = vmatprep.subr.bf16.mxu0 0
  %97 = vmatpush2.bf16.msra.mxu0 0
  %98 = vmatprep.subr.bf16.mxu0 0
  %99 = vmatpush2.bf16.msra.mxu0 0
  %100 = vmatprep.subr.bf16.mxu0 0
  %101 = vmatpush2.bf16.msra.mxu0 0
  %102 = vmatprep.subr.bf16.mxu0 0
  %103 = vmatpush2.bf16.msra.mxu0 0
  %104 = vmatprep.subr.bf16.mxu0 0
  %105 = vmatpush2.bf16.msra.mxu0 0
  %106 = vmatprep.mubr.bf16.mxu0 0
  %107 = vmatmul.mubr.bf16.gmra.mxu0 %v72
  %v108 = vpop.f32.mrf.mxu0
  %v109 = vadd.f32 %v39, %v108
  %v110 = vpop.f32.mrf.mxu0
  %v111 = vpop.f32.mrf.mxu0
  %v112 = vadd.f32 %v39, %v111
  %v113 = vpop.f32.mrf.mxu0
  %114 = vdwg.mxu0
  %v115 = vld [vmem:[%s3] sm:$0xf]
  %v116 = vld [vmem:[%s3 + $0x4] sm:$0xf]
  %v117 = vunpack.c.l.bf16 %v115
  %v118 = vunpack.c.l.bf16 %v116
  %v119 = vadd.f32 %v109, %v117
  %v120 = vadd.f32 %v112, %v118
  %vm121 = vcmask 261120
  %v122 = vsel %vm121, %v119, 0.0
  %123 = vadd.xlane.f32.xlu0 %v122
  %v124 = vpop.xlane.xlu0 %123
  %v125 = vsel %vm121, %v120, 0.0
  %126 = vadd.xlane.f32.xlu0 %v125
  %v127 = vpop.xlane.xlu0 %126
  %v128 = vrcp.pop 32.0
  %v129 = vmul.f32 %v124, %v128
  %v130 = vmul.f32 %v127, %v128
  %v131 = vsub.f32 %v119, %v129
  %v132 = vsub.f32 %v120, %v130
  %v133 = vmul.f32 %v131, %v131
  %v134 = vmul.f32 %v132, %v132
  %v135 = vsel %vm121, %v133, 0.0
  %136 = vadd.xlane.f32.xlu0 %v135
  %v137 = vpop.xlane.xlu0 %136
  %v138 = vsel %vm121, %v134, 0.0
  %139 = vadd.xlane.f32.xlu0 %v138
  %v140 = vpop.xlane.xlu0 %139
  %v141 = vmul.f32 %v137, %v128
  %v142 = vmul.f32 %v140, %v128
  %v143 = vadd.f32 %v141, 1e-12
  %v144 = vadd.f32 %v142, 1e-12
  %v145 = vrsqrt.pop %v143
  %v146 = vrsqrt.pop %v144
  %v147 = vmul.f32 %v131, %v145
  %v148 = vmul.f32 %v132, %v146
  %v149 = vld [vmem:[%s4] sm:$0x1]
  %v151 = vlaneseq
  %v152 = vshrl.u32 %v151, 7
  %v153 = vsub.s32 0, %v152
  %v154 = vrot.slane %v149, %v153
  %v156 = vmul.f32 %v147, %v154
  %v157 = vmul.f32 %v148, %v154
  %v158 = vld [vmem:[%s5] sm:$0x1]
  %v160 = vlaneseq
  %v161 = vshrl.u32 %v160, 7
  %v162 = vsub.s32 0, %v161
  %v163 = vrot.slane %v158, %v162
  %v165 = vadd.f32 %v156, %v163
  %v166 = vadd.f32 %v157, %v163
  %v167 = vpack.c.bf16 %v166, %v165
  %v169 = vunpack.c.l.b16 %v167
  %v170 = vunpack.c.h.b16 %v167
  %v171 = vpack.c.b16 %v169, %v169
  %v172 = vpack.c.b16 %v170, %v170
  %vm175 = vcmask 257024
  %176 = vst.msk [vmem:[%s6] sm:$0xf] %vm175, %v171
  %177 = vst.msk [vmem:[%s6 + $0x4] sm:$0xf] %vm175, %v172
  // Predicated region
  $region26: #{flash_att_encoder.14} parent=0 // pred_check
    _
  $region27: #{flash_att_encoder.14} parent=0 // pred_check_branch
    %179 = sbr.rel (0) target = $region29
  $region28: #{flash_att_encoder.14} parent=0 // pred_region
    _
  $region29: #{flash_att_encoder.14} parent=0 // pred_fallthru
    _
  // Predicated region
  $region30: #{flash_att_encoder.14} parent=0 // pred_check
    _
  $region31: #{flash_att_encoder.14} parent=0 // pred_check_branch
    %181 = sbr.rel (0) target = $region33
  $region32: #{flash_att_encoder.14} parent=0 // pred_region
    _
  $region33: #{flash_att_encoder.14} parent=0 // pred_fallthru
    _

</llo_original>
